<compile_context>
chip_gen: v5e
topology: v5e:2x2
jax: 0.10.0
libtpu: 0.0.40
codegen_flags: <defaults>
</compile_context>

<pallas_src>
import jax
import jax.numpy as jnp
from jax.experimental import pallas as pl
from jax.experimental.pallas import tpu as pltpu

KSIZE = 7
PAD = 3  # PyTorch module hardcodes padding=3


def _round_up(x, m):
    return ((x + m - 1) // m) * m


def _pick_tb(n, c, h, w):
    """Images per grid step: ~2 MiB double-buffered input, bounded unroll,
    keep >=2 grid steps when possible so v7x megacore can shard the batch."""
    per_img = c * h * w * 4
    cap = max(1, (2 * 1024 * 1024) // (2 * per_img))
    cap = min(cap, 8)                      # bound static unroll inside kernel
    if n >= 2:
        cap = min(cap, max(1, n // 2))     # keep at least 2 grid steps
    tb = 1
    for d in range(1, cap + 1):
        if n % d == 0:
            tb = d
    return tb


def sa_kernel(x_ref, w_ref, b_ref, o_ref, pad_ref):
    # x_ref:   (TB, C, H, W)        VMEM
    # w_ref:   (2*7*7,)             SMEM (flattened conv weights, c-major)
    # b_ref:   (1,)                 SMEM
    # o_ref:   (TB, 1, H, W)        VMEM
    # pad_ref: (2, H+6, Wl)         VMEM scratch, Wl = W+6 rounded up to 128
    TB, C, H, W = x_ref.shape
    inv_c = 1.0 / C

    # Zero the padded scratch once per grid step. Only the interior is
    # rewritten per image below, so the zero border persists across the TB
    # loop. (Done every step, not only at program_id==0, so it stays correct
    # when the 'parallel' batch axis is sharded across TensorCores.)
    pad_ref[...] = jnp.zeros_like(pad_ref)

    for b in range(TB):
        # ---- fused single-pass channel mean / max -------------------------
        s = x_ref[b, 0].astype(jnp.float32)          # (H, W)
        m = s
        for c in range(1, C):
            xc = x_ref[b, c].astype(jnp.float32)
            s = s + xc
            m = jnp.maximum(m, xc)
        pad_ref[0, PAD:PAD + H, PAD:PAD + W] = s * inv_c
        pad_ref[1, PAD:PAD + H, PAD:PAD + W] = m

        # ---- 7x7 conv (2 -> 1 channels), stride 1, padding 3 --------------
        # One lane-aligned row-slab load per (channel, di); the dj lane
        # shifts are static value-slices (XLU rotates, independent of each
        # other). 4 independent accumulators expose ILP to the 4 VALU slots.
        accs = [jnp.zeros((H, W), jnp.float32) for _ in range(4)]
        for c in range(2):
            for di in range(KSIZE):
                row = pad_ref[c, di:di + H, :]       # (H, Wl)
                a = 2 * c + (di & 1)
                base = c * KSIZE * KSIZE + di * KSIZE
                for dj in range(KSIZE):
                    accs[a] = accs[a] + w_ref[base + dj] * row[:, dj:dj + W]

        out = (accs[0] + accs[1]) + (accs[2] + accs[3]) + b_ref[0]
        o_ref[b, 0] = out.astype(o_ref.dtype)


def sa_forward(x, w, b):
    """x: (N, C, H, W) float32; w: (1, 2, 7, 7); b: (1,). Returns (N, 1, H, W)."""
    N, C, H, W = x.shape
    TB = _pick_tb(N, C, H, W)
    Wl = _round_up(W + 2 * PAD, 128)

    w_flat = w.reshape(-1).astype(jnp.float32)       # (2*7*7,) c-major, di, dj
    b1 = b.astype(jnp.float32)

    # VMEM budget: double-buffered input/output blocks + padded scratch.
    blk_in = TB * C * H * W * 4
    blk_out = TB * 1 * H * W * 4
    scratch_bytes = 2 * (H + 2 * PAD) * Wl * 4
    needed = 2 * (blk_in + blk_out) + scratch_bytes + (1 << 20)
    vmem_limit = int(min(48 * 2**20, needed)) if needed > 16 * 2**20 else None

    return pl.pallas_call(
        sa_kernel,
        out_shape=jax.ShapeDtypeStruct((N, 1, H, W), jnp.float32),
        grid_spec=pltpu.PrefetchScalarGridSpec(
            num_scalar_prefetch=0,
            grid=(N // TB,),
            in_specs=[
                pl.BlockSpec((TB, C, H, W), lambda n: (n, 0, 0, 0)),
                pl.BlockSpec(memory_space=pltpu.SMEM),   # conv weights (scalars)
                pl.BlockSpec(memory_space=pltpu.SMEM),   # bias
            ],
            out_specs=pl.BlockSpec((TB, 1, H, W), lambda n: (n, 0, 0, 0)),
            scratch_shapes=[pltpu.VMEM((2, H + 2 * PAD, Wl), jnp.float32)],
        ),
        compiler_params=pltpu.CompilerParams(
            dimension_semantics=("parallel",),
            vmem_limit_bytes=vmem_limit,
        ),
    )(x, w_flat, b1)


def sa_reference(x, w, b):
    """Pure-JAX reference (matches PyTorch semantics)."""
    avg = jnp.mean(x, axis=1, keepdims=True)
    mx = jnp.max(x, axis=1, keepdims=True)
    feat = jnp.concatenate([avg, mx], axis=1)           # (N, 2, H, W)
    out = jax.lax.conv_general_dilated(
        feat, w, window_strides=(1, 1), padding=[(PAD, PAD), (PAD, PAD)],
        dimension_numbers=("NCHW", "OIHW", "NCHW"),
    )
    return out + b.reshape(1, 1, 1, 1)


if __name__ == "__main__":
    key = jax.random.PRNGKey(0)
    kx, kw, kb = jax.random.split(key, 3)

    N, C, H, W = 2, 4, 16, 16
    x = jax.random.normal(kx, (N, C, H, W), dtype=jnp.float32)

    # Deterministic synthetic Conv2d(2, 1, kernel_size=7) parameters.
    fan_in = 2 * KSIZE * KSIZE
    bound = 1.0 / (fan_in ** 0.5)
    w = jax.random.uniform(kw, (1, 2, KSIZE, KSIZE), jnp.float32, -bound, bound)
    b = jax.random.uniform(kb, (1,), jnp.float32, -bound, bound)

    out = sa_forward(x, w, b)
    out = jax.block_until_ready(out)

    ref = sa_reference(x, w, b)
    assert out.shape == (N, 1, H, W)
    assert jnp.allclose(out, ref, atol=1e-4, rtol=1e-4), (
        f"max abs err {jnp.max(jnp.abs(out - ref))}")

    print("KERNEL_OK")
</pallas_src>

<mosaic_0001>
module attributes {stable_mosaic.version = 11 : i64} {
  func.func @sa_kernel(%arg0: i32, %arg1: memref<1x4x16x16xf32, #tpu.memory_space<vmem>>, %arg2: memref<98xf32, #tpu.memory_space<smem>>, %arg3: memref<1xf32, #tpu.memory_space<smem>>, %arg4: memref<1x1x16x16xf32, #tpu.memory_space<vmem>>, %arg5: memref<2x22x128xf32, #tpu.memory_space<vmem>>) attributes {dimension_semantics = [#tpu.dimension_semantics<parallel>], iteration_bounds = array<i64: 2>, scalar_prefetch = 0 : i64, scratch_operands = 1 : i64, tpu.core_type = #tpu.core_type<tc>, window_params = [{transform_indices = @transform_0, window_bounds = array<i64: 1, 4, 16, 16>}, {transform_indices = @transform_1, window_bounds = array<i64: 98>}, {transform_indices = @transform_2, window_bounds = array<i64: 1>}, {transform_indices = @transform_3, window_bounds = array<i64: 1, 1, 16, 16>}]} {
    %cst = arith.constant 0.000000e+00 : f32
    %0 = vector.broadcast %cst : f32 to vector<2x22x128xf32>
    %c0 = arith.constant 0 : index
    %c0_0 = arith.constant 0 : index
    %c0_1 = arith.constant 0 : index
    %1 = vector.load %arg5[%c0, %c0_0, %c0_1] : memref<2x22x128xf32, #tpu.memory_space<vmem>>, vector<2x22x128xf32>
    tpu.vector_store %arg5[%c0, %c0_0, %c0_1], %0 {strides = array<i32>} : memref<2x22x128xf32, #tpu.memory_space<vmem>>, vector<2x22x128xf32>,
    %c0_2 = arith.constant 0 : index
    %c0_3 = arith.constant 0 : index
    %c0_4 = arith.constant 0 : index
    %c0_5 = arith.constant 0 : index
    %2 = vector.load %arg1[%c0_2, %c0_3, %c0_4, %c0_5] : memref<1x4x16x16xf32, #tpu.memory_space<vmem>>, vector<1x1x16x16xf32>
    %3 = vector.shape_cast %2 : vector<1x1x16x16xf32> to vector<16x16xf32>
    %c0_6 = arith.constant 0 : index
    %c1 = arith.constant 1 : index
    %c0_7 = arith.constant 0 : index
    %c0_8 = arith.constant 0 : index
    %4 = vector.load %arg1[%c0_6, %c1, %c0_7, %c0_8] : memref<1x4x16x16xf32, #tpu.memory_space<vmem>>, vector<1x1x16x16xf32>
    %5 = vector.shape_cast %4 : vector<1x1x16x16xf32> to vector<16x16xf32>
    %6 = arith.addf %3, %5 : vector<16x16xf32>
    %7 = arith.maximumf %3, %5 : vector<16x16xf32>
    %c0_9 = arith.constant 0 : index
    %c2 = arith.constant 2 : index
    %c0_10 = arith.constant 0 : index
    %c0_11 = arith.constant 0 : index
    %8 = vector.load %arg1[%c0_9, %c2, %c0_10, %c0_11] : memref<1x4x16x16xf32, #tpu.memory_space<vmem>>, vector<1x1x16x16xf32>
    %9 = vector.shape_cast %8 : vector<1x1x16x16xf32> to vector<16x16xf32>
    %10 = arith.addf %6, %9 : vector<16x16xf32>
    %11 = arith.maximumf %7, %9 : vector<16x16xf32>
    %c0_12 = arith.constant 0 : index
    %c3 = arith.constant 3 : index
    %c0_13 = arith.constant 0 : index
    %c0_14 = arith.constant 0 : index
    %12 = vector.load %arg1[%c0_12, %c3, %c0_13, %c0_14] : memref<1x4x16x16xf32, #tpu.memory_space<vmem>>, vector<1x1x16x16xf32>
    %13 = vector.shape_cast %12 : vector<1x1x16x16xf32> to vector<16x16xf32>
    %14 = arith.addf %10, %13 : vector<16x16xf32>
    %15 = arith.maximumf %11, %13 : vector<16x16xf32>
    %cst_15 = arith.constant 2.500000e-01 : f32
    %16 = vector.broadcast %cst_15 : f32 to vector<16x16xf32>
    %17 = arith.mulf %14, %16 : vector<16x16xf32>
    %c0_16 = arith.constant 0 : index
    %c3_17 = arith.constant 3 : index
    %c3_18 = arith.constant 3 : index
    %18 = vector.load %arg5[%c0_16, %c3_17, %c3_18] : memref<2x22x128xf32, #tpu.memory_space<vmem>>, vector<1x16x16xf32>
    %19 = vector.shape_cast %18 : vector<1x16x16xf32> to vector<16x16xf32>
    %20 = vector.shape_cast %17 : vector<16x16xf32> to vector<1x16x16xf32>
    tpu.vector_store %arg5[%c0_16, %c3_17, %c3_18], %20 {strides = array<i32>} : memref<2x22x128xf32, #tpu.memory_space<vmem>>, vector<1x16x16xf32>,
    %c1_19 = arith.constant 1 : index
    %c3_20 = arith.constant 3 : index
    %c3_21 = arith.constant 3 : index
    %21 = vector.load %arg5[%c1_19, %c3_20, %c3_21] : memref<2x22x128xf32, #tpu.memory_space<vmem>>, vector<1x16x16xf32>
    %22 = vector.shape_cast %21 : vector<1x16x16xf32> to vector<16x16xf32>
    %23 = vector.shape_cast %15 : vector<16x16xf32> to vector<1x16x16xf32>
    tpu.vector_store %arg5[%c1_19, %c3_20, %c3_21], %23 {strides = array<i32>} : memref<2x22x128xf32, #tpu.memory_space<vmem>>, vector<1x16x16xf32>,
    %cst_22 = arith.constant 0.000000e+00 : f32
    %24 = vector.broadcast %cst_22 : f32 to vector<16x16xf32>
    %cst_23 = arith.constant 0.000000e+00 : f32
    %25 = vector.broadcast %cst_23 : f32 to vector<16x16xf32>
    %cst_24 = arith.constant 0.000000e+00 : f32
    %26 = vector.broadcast %cst_24 : f32 to vector<16x16xf32>
    %cst_25 = arith.constant 0.000000e+00 : f32
    %27 = vector.broadcast %cst_25 : f32 to vector<16x16xf32>
    %c0_26 = arith.constant 0 : index
    %c0_27 = arith.constant 0 : index
    %c0_28 = arith.constant 0 : index
    %28 = vector.load %arg5[%c0_26, %c0_27, %c0_28] : memref<2x22x128xf32, #tpu.memory_space<vmem>>, vector<1x16x128xf32>
    %29 = vector.shape_cast %28 : vector<1x16x128xf32> to vector<16x128xf32>
    %c0_29 = arith.constant 0 : index
    %30 = memref.load %arg2[%c0_29] : memref<98xf32, #tpu.memory_space<smem>>
    %31 = vector.extract_strided_slice %29 {offsets = [0, 0], sizes = [16, 16], strides = [1, 1]} : vector<16x128xf32> to vector<16x16xf32>
    %32 = vector.broadcast %30 : f32 to vector<16x16xf32>
    %33 = arith.mulf %32, %31 : vector<16x16xf32>
    %34 = arith.addf %24, %33 : vector<16x16xf32>
    %c1_30 = arith.constant 1 : index
    %35 = memref.load %arg2[%c1_30] : memref<98xf32, #tpu.memory_space<smem>>
    %36 = vector.extract_strided_slice %29 {offsets = [0, 1], sizes = [16, 16], strides = [1, 1]} : vector<16x128xf32> to vector<16x16xf32>
    %37 = vector.broadcast %35 : f32 to vector<16x16xf32>
    %38 = arith.mulf %37, %36 : vector<16x16xf32>
    %39 = arith.addf %34, %38 : vector<16x16xf32>
    %c2_31 = arith.constant 2 : index
    %40 = memref.load %arg2[%c2_31] : memref<98xf32, #tpu.memory_space<smem>>
    %41 = vector.extract_strided_slice %29 {offsets = [0, 2], sizes = [16, 16], strides = [1, 1]} : vector<16x128xf32> to vector<16x16xf32>
    %42 = vector.broadcast %40 : f32 to vector<16x16xf32>
    %43 = arith.mulf %42, %41 : vector<16x16xf32>
    %44 = arith.addf %39, %43 : vector<16x16xf32>
    %c3_32 = arith.constant 3 : index
    %45 = memref.load %arg2[%c3_32] : memref<98xf32, #tpu.memory_space<smem>>
    %46 = vector.extract_strided_slice %29 {offsets = [0, 3], sizes = [16, 16], strides = [1, 1]} : vector<16x128xf32> to vector<16x16xf32>
    %47 = vector.broadcast %45 : f32 to vector<16x16xf32>
    %48 = arith.mulf %47, %46 : vector<16x16xf32>
    %49 = arith.addf %44, %48 : vector<16x16xf32>
    %c4 = arith.constant 4 : index
    %50 = memref.load %arg2[%c4] : memref<98xf32, #tpu.memory_space<smem>>
    %51 = vector.extract_strided_slice %29 {offsets = [0, 4], sizes = [16, 16], strides = [1, 1]} : vector<16x128xf32> to vector<16x16xf32>
    %52 = vector.broadcast %50 : f32 to vector<16x16xf32>
    %53 = arith.mulf %52, %51 : vector<16x16xf32>
    %54 = arith.addf %49, %53 : vector<16x16xf32>
    %c5 = arith.constant 5 : index
    %55 = memref.load %arg2[%c5] : memref<98xf32, #tpu.memory_space<smem>>
    %56 = vector.extract_strided_slice %29 {offsets = [0, 5], sizes = [16, 16], strides = [1, 1]} : vector<16x128xf32> to vector<16x16xf32>
    %57 = vector.broadcast %55 : f32 to vector<16x16xf32>
    %58 = arith.mulf %57, %56 : vector<16x16xf32>
    %59 = arith.addf %54, %58 : vector<16x16xf32>
    %c6 = arith.constant 6 : index
    %60 = memref.load %arg2[%c6] : memref<98xf32, #tpu.memory_space<smem>>
    %61 = vector.extract_strided_slice %29 {offsets = [0, 6], sizes = [16, 16], strides = [1, 1]} : vector<16x128xf32> to vector<16x16xf32>
    %62 = vector.broadcast %60 : f32 to vector<16x16xf32>
    %63 = arith.mulf %62, %61 : vector<16x16xf32>
    %64 = arith.addf %59, %63 : vector<16x16xf32>
    %c0_33 = arith.constant 0 : index
    %c1_34 = arith.constant 1 : index
    %c0_35 = arith.constant 0 : index
    %65 = vector.load %arg5[%c0_33, %c1_34, %c0_35] : memref<2x22x128xf32, #tpu.memory_space<vmem>>, vector<1x16x128xf32>
    %66 = vector.shape_cast %65 : vector<1x16x128xf32> to vector<16x128xf32>
    %c7 = arith.constant 7 : index
    %67 = memref.load %arg2[%c7] : memref<98xf32, #tpu.memory_space<smem>>
    %68 = vector.extract_strided_slice %66 {offsets = [0, 0], sizes = [16, 16], strides = [1, 1]} : vector<16x128xf32> to vector<16x16xf32>
    %69 = vector.broadcast %67 : f32 to vector<16x16xf32>
    %70 = arith.mulf %69, %68 : vector<16x16xf32>
    %71 = arith.addf %25, %70 : vector<16x16xf32>
    %c8 = arith.constant 8 : index
    %72 = memref.load %arg2[%c8] : memref<98xf32, #tpu.memory_space<smem>>
    %73 = vector.extract_strided_slice %66 {offsets = [0, 1], sizes = [16, 16], strides = [1, 1]} : vector<16x128xf32> to vector<16x16xf32>
    %74 = vector.broadcast %72 : f32 to vector<16x16xf32>
    %75 = arith.mulf %74, %73 : vector<16x16xf32>
    %76 = arith.addf %71, %75 : vector<16x16xf32>
    %c9 = arith.constant 9 : index
    %77 = memref.load %arg2[%c9] : memref<98xf32, #tpu.memory_space<smem>>
    %78 = vector.extract_strided_slice %66 {offsets = [0, 2], sizes = [16, 16], strides = [1, 1]} : vector<16x128xf32> to vector<16x16xf32>
    %79 = vector.broadcast %77 : f32 to vector<16x16xf32>
    %80 = arith.mulf %79, %78 : vector<16x16xf32>
    %81 = arith.addf %76, %80 : vector<16x16xf32>
    %c10 = arith.constant 10 : index
    %82 = memref.load %arg2[%c10] : memref<98xf32, #tpu.memory_space<smem>>
    %83 = vector.extract_strided_slice %66 {offsets = [0, 3], sizes = [16, 16], strides = [1, 1]} : vector<16x128xf32> to vector<16x16xf32>
    %84 = vector.broadcast %82 : f32 to vector<16x16xf32>
    %85 = arith.mulf %84, %83 : vector<16x16xf32>
    %86 = arith.addf %81, %85 : vector<16x16xf32>
    %c11 = arith.constant 11 : index
    %87 = memref.load %arg2[%c11] : memref<98xf32, #tpu.memory_space<smem>>
    %88 = vector.extract_strided_slice %66 {offsets = [0, 4], sizes = [16, 16], strides = [1, 1]} : vector<16x128xf32> to vector<16x16xf32>
    %89 = vector.broadcast %87 : f32 to vector<16x16xf32>
    %90 = arith.mulf %89, %88 : vector<16x16xf32>
    %91 = arith.addf %86, %90 : vector<16x16xf32>
    %c12 = arith.constant 12 : index
    %92 = memref.load %arg2[%c12] : memref<98xf32, #tpu.memory_space<smem>>
    %93 = vector.extract_strided_slice %66 {offsets = [0, 5], sizes = [16, 16], strides = [1, 1]} : vector<16x128xf32> to vector<16x16xf32>
    %94 = vector.broadcast %92 : f32 to vector<16x16xf32>
    %95 = arith.mulf %94, %93 : vector<16x16xf32>
    %96 = arith.addf %91, %95 : vector<16x16xf32>
    %c13 = arith.constant 13 : index
    %97 = memref.load %arg2[%c13] : memref<98xf32, #tpu.memory_space<smem>>
    %98 = vector.extract_strided_slice %66 {offsets = [0, 6], sizes = [16, 16], strides = [1, 1]} : vector<16x128xf32> to vector<16x16xf32>
    %99 = vector.broadcast %97 : f32 to vector<16x16xf32>
    %100 = arith.mulf %99, %98 : vector<16x16xf32>
    %101 = arith.addf %96, %100 : vector<16x16xf32>
    %c0_36 = arith.constant 0 : index
    %c2_37 = arith.constant 2 : index
    %c0_38 = arith.constant 0 : index
    %102 = vector.load %arg5[%c0_36, %c2_37, %c0_38] : memref<2x22x128xf32, #tpu.memory_space<vmem>>, vector<1x16x128xf32>
    %103 = vector.shape_cast %102 : vector<1x16x128xf32> to vector<16x128xf32>
    %c14 = arith.constant 14 : index
    %104 = memref.load %arg2[%c14] : memref<98xf32, #tpu.memory_space<smem>>
    %105 = vector.extract_strided_slice %103 {offsets = [0, 0], sizes = [16, 16], strides = [1, 1]} : vector<16x128xf32> to vector<16x16xf32>
    %106 = vector.broadcast %104 : f32 to vector<16x16xf32>
    %107 = arith.mulf %106, %105 : vector<16x16xf32>
    %108 = arith.addf %64, %107 : vector<16x16xf32>
    %c15 = arith.constant 15 : index
    %109 = memref.load %arg2[%c15] : memref<98xf32, #tpu.memory_space<smem>>
    %110 = vector.extract_strided_slice %103 {offsets = [0, 1], sizes = [16, 16], strides = [1, 1]} : vector<16x128xf32> to vector<16x16xf32>
    %111 = vector.broadcast %109 : f32 to vector<16x16xf32>
    %112 = arith.mulf %111, %110 : vector<16x16xf32>
    %113 = arith.addf %108, %112 : vector<16x16xf32>
    %c16 = arith.constant 16 : index
    %114 = memref.load %arg2[%c16] : memref<98xf32, #tpu.memory_space<smem>>
    %115 = vector.extract_strided_slice %103 {offsets = [0, 2], sizes = [16, 16], strides = [1, 1]} : vector<16x128xf32> to vector<16x16xf32>
    %116 = vector.broadcast %114 : f32 to vector<16x16xf32>
    %117 = arith.mulf %116, %115 : vector<16x16xf32>
    %118 = arith.addf %113, %117 : vector<16x16xf32>
    %c17 = arith.constant 17 : index
    %119 = memref.load %arg2[%c17] : memref<98xf32, #tpu.memory_space<smem>>
    %120 = vector.extract_strided_slice %103 {offsets = [0, 3], sizes = [16, 16], strides = [1, 1]} : vector<16x128xf32> to vector<16x16xf32>
    %121 = vector.broadcast %119 : f32 to vector<16x16xf32>
    %122 = arith.mulf %121, %120 : vector<16x16xf32>
    %123 = arith.addf %118, %122 : vector<16x16xf32>
    %c18 = arith.constant 18 : index
    %124 = memref.load %arg2[%c18] : memref<98xf32, #tpu.memory_space<smem>>
    %125 = vector.extract_strided_slice %103 {offsets = [0, 4], sizes = [16, 16], strides = [1, 1]} : vector<16x128xf32> to vector<16x16xf32>
    %126 = vector.broadcast %124 : f32 to vector<16x16xf32>
    %127 = arith.mulf %126, %125 : vector<16x16xf32>
    %128 = arith.addf %123, %127 : vector<16x16xf32>
    %c19 = arith.constant 19 : index
    %129 = memref.load %arg2[%c19] : memref<98xf32, #tpu.memory_space<smem>>
    %130 = vector.extract_strided_slice %103 {offsets = [0, 5], sizes = [16, 16], strides = [1, 1]} : vector<16x128xf32> to vector<16x16xf32>
    %131 = vector.broadcast %129 : f32 to vector<16x16xf32>
    %132 = arith.mulf %131, %130 : vector<16x16xf32>
    %133 = arith.addf %128, %132 : vector<16x16xf32>
    %c20 = arith.constant 20 : index
    %134 = memref.load %arg2[%c20] : memref<98xf32, #tpu.memory_space<smem>>
    %135 = vector.extract_strided_slice %103 {offsets = [0, 6], sizes = [16, 16], strides = [1, 1]} : vector<16x128xf32> to vector<16x16xf32>
    %136 = vector.broadcast %134 : f32 to vector<16x16xf32>
    %137 = arith.mulf %136, %135 : vector<16x16xf32>
    %138 = arith.addf %133, %137 : vector<16x16xf32>
    %c0_39 = arith.constant 0 : index
    %c3_40 = arith.constant 3 : index
    %c0_41 = arith.constant 0 : index
    %139 = vector.load %arg5[%c0_39, %c3_40, %c0_41] : memref<2x22x128xf32, #tpu.memory_space<vmem>>, vector<1x16x128xf32>
    %140 = vector.shape_cast %139 : vector<1x16x128xf32> to vector<16x128xf32>
    %c21 = arith.constant 21 : index
    %141 = memref.load %arg2[%c21] : memref<98xf32, #tpu.memory_space<smem>>
    %142 = vector.extract_strided_slice %140 {offsets = [0, 0], sizes = [16, 16], strides = [1, 1]} : vector<16x128xf32> to vector<16x16xf32>
    %143 = vector.broadcast %141 : f32 to vector<16x16xf32>
    %144 = arith.mulf %143, %142 : vector<16x16xf32>
    %145 = arith.addf %101, %144 : vector<16x16xf32>
    %c22 = arith.constant 22 : index
    %146 = memref.load %arg2[%c22] : memref<98xf32, #tpu.memory_space<smem>>
    %147 = vector.extract_strided_slice %140 {offsets = [0, 1], sizes = [16, 16], strides = [1, 1]} : vector<16x128xf32> to vector<16x16xf32>
    %148 = vector.broadcast %146 : f32 to vector<16x16xf32>
    %149 = arith.mulf %148, %147 : vector<16x16xf32>
    %150 = arith.addf %145, %149 : vector<16x16xf32>
    %c23 = arith.constant 23 : index
    %151 = memref.load %arg2[%c23] : memref<98xf32, #tpu.memory_space<smem>>
    %152 = vector.extract_strided_slice %140 {offsets = [0, 2], sizes = [16, 16], strides = [1, 1]} : vector<16x128xf32> to vector<16x16xf32>
    %153 = vector.broadcast %151 : f32 to vector<16x16xf32>
    %154 = arith.mulf %153, %152 : vector<16x16xf32>
    %155 = arith.addf %150, %154 : vector<16x16xf32>
    %c24 = arith.constant 24 : index
    %156 = memref.load %arg2[%c24] : memref<98xf32, #tpu.memory_space<smem>>
    %157 = vector.extract_strided_slice %140 {offsets = [0, 3], sizes = [16, 16], strides = [1, 1]} : vector<16x128xf32> to vector<16x16xf32>
    %158 = vector.broadcast %156 : f32 to vector<16x16xf32>
    %159 = arith.mulf %158, %157 : vector<16x16xf32>
    %160 = arith.addf %155, %159 : vector<16x16xf32>
    %c25 = arith.constant 25 : index
    %161 = memref.load %arg2[%c25] : memref<98xf32, #tpu.memory_space<smem>>
    %162 = vector.extract_strided_slice %140 {offsets = [0, 4], sizes = [16, 16], strides = [1, 1]} : vector<16x128xf32> to vector<16x16xf32>
    %163 = vector.broadcast %161 : f32 to vector<16x16xf32>
    %164 = arith.mulf %163, %162 : vector<16x16xf32>
    %165 = arith.addf %160, %164 : vector<16x16xf32>
    %c26 = arith.constant 26 : index
    %166 = memref.load %arg2[%c26] : memref<98xf32, #tpu.memory_space<smem>>
    %167 = vector.extract_strided_slice %140 {offsets = [0, 5], sizes = [16, 16], strides = [1, 1]} : vector<16x128xf32> to vector<16x16xf32>
    %168 = vector.broadcast %166 : f32 to vector<16x16xf32>
    %169 = arith.mulf %168, %167 : vector<16x16xf32>
    %170 = arith.addf %165, %169 : vector<16x16xf32>
    %c27 = arith.constant 27 : index
    %171 = memref.load %arg2[%c27] : memref<98xf32, #tpu.memory_space<smem>>
    %172 = vector.extract_strided_slice %140 {offsets = [0, 6], sizes = [16, 16], strides = [1, 1]} : vector<16x128xf32> to vector<16x16xf32>
    %173 = vector.broadcast %171 : f32 to vector<16x16xf32>
    %174 = arith.mulf %173, %172 : vector<16x16xf32>
    %175 = arith.addf %170, %174 : vector<16x16xf32>
    %c0_42 = arith.constant 0 : index
    %c4_43 = arith.constant 4 : index
    %c0_44 = arith.constant 0 : index
    %176 = vector.load %arg5[%c0_42, %c4_43, %c0_44] : memref<2x22x128xf32, #tpu.memory_space<vmem>>, vector<1x16x128xf32>
    %177 = vector.shape_cast %176 : vector<1x16x128xf32> to vector<16x128xf32>
    %c28 = arith.constant 28 : index
    %178 = memref.load %arg2[%c28] : memref<98xf32, #tpu.memory_space<smem>>
    %179 = vector.extract_strided_slice %177 {offsets = [0, 0], sizes = [16, 16], strides = [1, 1]} : vector<16x128xf32> to vector<16x16xf32>
    %180 = vector.broadcast %178 : f32 to vector<16x16xf32>
    %181 = arith.mulf %180, %179 : vector<16x16xf32>
    %182 = arith.addf %138, %181 : vector<16x16xf32>
    %c29 = arith.constant 29 : index
    %183 = memref.load %arg2[%c29] : memref<98xf32, #tpu.memory_space<smem>>
    %184 = vector.extract_strided_slice %177 {offsets = [0, 1], sizes = [16, 16], strides = [1, 1]} : vector<16x128xf32> to vector<16x16xf32>
    %185 = vector.broadcast %183 : f32 to vector<16x16xf32>
    %186 = arith.mulf %185, %184 : vector<16x16xf32>
    %187 = arith.addf %182, %186 : vector<16x16xf32>
    %c30 = arith.constant 30 : index
    %188 = memref.load %arg2[%c30] : memref<98xf32, #tpu.memory_space<smem>>
    %189 = vector.extract_strided_slice %177 {offsets = [0, 2], sizes = [16, 16], strides = [1, 1]} : vector<16x128xf32> to vector<16x16xf32>
    %190 = vector.broadcast %188 : f32 to vector<16x16xf32>
    %191 = arith.mulf %190, %189 : vector<16x16xf32>
    %192 = arith.addf %187, %191 : vector<16x16xf32>
    %c31 = arith.constant 31 : index
    %193 = memref.load %arg2[%c31] : memref<98xf32, #tpu.memory_space<smem>>
    %194 = vector.extract_strided_slice %177 {offsets = [0, 3], sizes = [16, 16], strides = [1, 1]} : vector<16x128xf32> to vector<16x16xf32>
    %195 = vector.broadcast %193 : f32 to vector<16x16xf32>
    %196 = arith.mulf %195, %194 : vector<16x16xf32>
    %197 = arith.addf %192, %196 : vector<16x16xf32>
    %c32 = arith.constant 32 : index
    %198 = memref.load %arg2[%c32] : memref<98xf32, #tpu.memory_space<smem>>
    %199 = vector.extract_strided_slice %177 {offsets = [0, 4], sizes = [16, 16], strides = [1, 1]} : vector<16x128xf32> to vector<16x16xf32>
    %200 = vector.broadcast %198 : f32 to vector<16x16xf32>
    %201 = arith.mulf %200, %199 : vector<16x16xf32>
    %202 = arith.addf %197, %201 : vector<16x16xf32>
    %c33 = arith.constant 33 : index
    %203 = memref.load %arg2[%c33] : memref<98xf32, #tpu.memory_space<smem>>
    %204 = vector.extract_strided_slice %177 {offsets = [0, 5], sizes = [16, 16], strides = [1, 1]} : vector<16x128xf32> to vector<16x16xf32>
    %205 = vector.broadcast %203 : f32 to vector<16x16xf32>
    %206 = arith.mulf %205, %204 : vector<16x16xf32>
    %207 = arith.addf %202, %206 : vector<16x16xf32>
    %c34 = arith.constant 34 : index
    %208 = memref.load %arg2[%c34] : memref<98xf32, #tpu.memory_space<smem>>
    %209 = vector.extract_strided_slice %177 {offsets = [0, 6], sizes = [16, 16], strides = [1, 1]} : vector<16x128xf32> to vector<16x16xf32>
    %210 = vector.broadcast %208 : f32 to vector<16x16xf32>
    %211 = arith.mulf %210, %209 : vector<16x16xf32>
    %212 = arith.addf %207, %211 : vector<16x16xf32>
    %c0_45 = arith.constant 0 : index
    %c5_46 = arith.constant 5 : index
    %c0_47 = arith.constant 0 : index
    %213 = vector.load %arg5[%c0_45, %c5_46, %c0_47] : memref<2x22x128xf32, #tpu.memory_space<vmem>>, vector<1x16x128xf32>
    %214 = vector.shape_cast %213 : vector<1x16x128xf32> to vector<16x128xf32>
    %c35 = arith.constant 35 : index
    %215 = memref.load %arg2[%c35] : memref<98xf32, #tpu.memory_space<smem>>
    %216 = vector.extract_strided_slice %214 {offsets = [0, 0], sizes = [16, 16], strides = [1, 1]} : vector<16x128xf32> to vector<16x16xf32>
    %217 = vector.broadcast %215 : f32 to vector<16x16xf32>
    %218 = arith.mulf %217, %216 : vector<16x16xf32>
    %219 = arith.addf %175, %218 : vector<16x16xf32>
    %c36 = arith.constant 36 : index
    %220 = memref.load %arg2[%c36] : memref<98xf32, #tpu.memory_space<smem>>
    %221 = vector.extract_strided_slice %214 {offsets = [0, 1], sizes = [16, 16], strides = [1, 1]} : vector<16x128xf32> to vector<16x16xf32>
    %222 = vector.broadcast %220 : f32 to vector<16x16xf32>
    %223 = arith.mulf %222, %221 : vector<16x16xf32>
    %224 = arith.addf %219, %223 : vector<16x16xf32>
    %c37 = arith.constant 37 : index
    %225 = memref.load %arg2[%c37] : memref<98xf32, #tpu.memory_space<smem>>
    %226 = vector.extract_strided_slice %214 {offsets = [0, 2], sizes = [16, 16], strides = [1, 1]} : vector<16x128xf32> to vector<16x16xf32>
    %227 = vector.broadcast %225 : f32 to vector<16x16xf32>
    %228 = arith.mulf %227, %226 : vector<16x16xf32>
    %229 = arith.addf %224, %228 : vector<16x16xf32>
    %c38 = arith.constant 38 : index
    %230 = memref.load %arg2[%c38] : memref<98xf32, #tpu.memory_space<smem>>
    %231 = vector.extract_strided_slice %214 {offsets = [0, 3], sizes = [16, 16], strides = [1, 1]} : vector<16x128xf32> to vector<16x16xf32>
    %232 = vector.broadcast %230 : f32 to vector<16x16xf32>
    %233 = arith.mulf %232, %231 : vector<16x16xf32>
    %234 = arith.addf %229, %233 : vector<16x16xf32>
    %c39 = arith.constant 39 : index
    %235 = memref.load %arg2[%c39] : memref<98xf32, #tpu.memory_space<smem>>
    %236 = vector.extract_strided_slice %214 {offsets = [0, 4], sizes = [16, 16], strides = [1, 1]} : vector<16x128xf32> to vector<16x16xf32>
    %237 = vector.broadcast %235 : f32 to vector<16x16xf32>
    %238 = arith.mulf %237, %236 : vector<16x16xf32>
    %239 = arith.addf %234, %238 : vector<16x16xf32>
    %c40 = arith.constant 40 : index
    %240 = memref.load %arg2[%c40] : memref<98xf32, #tpu.memory_space<smem>>
    %241 = vector.extract_strided_slice %214 {offsets = [0, 5], sizes = [16, 16], strides = [1, 1]} : vector<16x128xf32> to vector<16x16xf32>
    %242 = vector.broadcast %240 : f32 to vector<16x16xf32>
    %243 = arith.mulf %242, %241 : vector<16x16xf32>
    %244 = arith.addf %239, %243 : vector<16x16xf32>
    %c41 = arith.constant 41 : index
    %245 = memref.load %arg2[%c41] : memref<98xf32, #tpu.memory_space<smem>>
    %246 = vector.extract_strided_slice %214 {offsets = [0, 6], sizes = [16, 16], strides = [1, 1]} : vector<16x128xf32> to vector<16x16xf32>
    %247 = vector.broadcast %245 : f32 to vector<16x16xf32>
    %248 = arith.mulf %247, %246 : vector<16x16xf32>
    %249 = arith.addf %244, %248 : vector<16x16xf32>
    %c0_48 = arith.constant 0 : index
    %c6_49 = arith.constant 6 : index
    %c0_50 = arith.constant 0 : index
    %250 = vector.load %arg5[%c0_48, %c6_49, %c0_50] : memref<2x22x128xf32, #tpu.memory_space<vmem>>, vector<1x16x128xf32>
    %251 = vector.shape_cast %250 : vector<1x16x128xf32> to vector<16x128xf32>
    %c42 = arith.constant 42 : index
    %252 = memref.load %arg2[%c42] : memref<98xf32, #tpu.memory_space<smem>>
    %253 = vector.extract_strided_slice %251 {offsets = [0, 0], sizes = [16, 16], strides = [1, 1]} : vector<16x128xf32> to vector<16x16xf32>
    %254 = vector.broadcast %252 : f32 to vector<16x16xf32>
    %255 = arith.mulf %254, %253 : vector<16x16xf32>
    %256 = arith.addf %212, %255 : vector<16x16xf32>
    %c43 = arith.constant 43 : index
    %257 = memref.load %arg2[%c43] : memref<98xf32, #tpu.memory_space<smem>>
    %258 = vector.extract_strided_slice %251 {offsets = [0, 1], sizes = [16, 16], strides = [1, 1]} : vector<16x128xf32> to vector<16x16xf32>
    %259 = vector.broadcast %257 : f32 to vector<16x16xf32>
    %260 = arith.mulf %259, %258 : vector<16x16xf32>
    %261 = arith.addf %256, %260 : vector<16x16xf32>
    %c44 = arith.constant 44 : index
    %262 = memref.load %arg2[%c44] : memref<98xf32, #tpu.memory_space<smem>>
    %263 = vector.extract_strided_slice %251 {offsets = [0, 2], sizes = [16, 16], strides = [1, 1]} : vector<16x128xf32> to vector<16x16xf32>
    %264 = vector.broadcast %262 : f32 to vector<16x16xf32>
    %265 = arith.mulf %264, %263 : vector<16x16xf32>
    %266 = arith.addf %261, %265 : vector<16x16xf32>
    %c45 = arith.constant 45 : index
    %267 = memref.load %arg2[%c45] : memref<98xf32, #tpu.memory_space<smem>>
    %268 = vector.extract_strided_slice %251 {offsets = [0, 3], sizes = [16, 16], strides = [1, 1]} : vector<16x128xf32> to vector<16x16xf32>
    %269 = vector.broadcast %267 : f32 to vector<16x16xf32>
    %270 = arith.mulf %269, %268 : vector<16x16xf32>
    %271 = arith.addf %266, %270 : vector<16x16xf32>
    %c46 = arith.constant 46 : index
    %272 = memref.load %arg2[%c46] : memref<98xf32, #tpu.memory_space<smem>>
    %273 = vector.extract_strided_slice %251 {offsets = [0, 4], sizes = [16, 16], strides = [1, 1]} : vector<16x128xf32> to vector<16x16xf32>
    %274 = vector.broadcast %272 : f32 to vector<16x16xf32>
    %275 = arith.mulf %274, %273 : vector<16x16xf32>
    %276 = arith.addf %271, %275 : vector<16x16xf32>
    %c47 = arith.constant 47 : index
    %277 = memref.load %arg2[%c47] : memref<98xf32, #tpu.memory_space<smem>>
    %278 = vector.extract_strided_slice %251 {offsets = [0, 5], sizes = [16, 16], strides = [1, 1]} : vector<16x128xf32> to vector<16x16xf32>
    %279 = vector.broadcast %277 : f32 to vector<16x16xf32>
    %280 = arith.mulf %279, %278 : vector<16x16xf32>
    %281 = arith.addf %276, %280 : vector<16x16xf32>
    %c48 = arith.constant 48 : index
    %282 = memref.load %arg2[%c48] : memref<98xf32, #tpu.memory_space<smem>>
    %283 = vector.extract_strided_slice %251 {offsets = [0, 6], sizes = [16, 16], strides = [1, 1]} : vector<16x128xf32> to vector<16x16xf32>
    %284 = vector.broadcast %282 : f32 to vector<16x16xf32>
    %285 = arith.mulf %284, %283 : vector<16x16xf32>
    %286 = arith.addf %281, %285 : vector<16x16xf32>
    %c1_51 = arith.constant 1 : index
    %c0_52 = arith.constant 0 : index
    %c0_53 = arith.constant 0 : index
    %287 = vector.load %arg5[%c1_51, %c0_52, %c0_53] : memref<2x22x128xf32, #tpu.memory_space<vmem>>, vector<1x16x128xf32>
    %288 = vector.shape_cast %287 : vector<1x16x128xf32> to vector<16x128xf32>
    %c49 = arith.constant 49 : index
    %289 = memref.load %arg2[%c49] : memref<98xf32, #tpu.memory_space<smem>>
    %290 = vector.extract_strided_slice %288 {offsets = [0, 0], sizes = [16, 16], strides = [1, 1]} : vector<16x128xf32> to vector<16x16xf32>
    %291 = vector.broadcast %289 : f32 to vector<16x16xf32>
    %292 = arith.mulf %291, %290 : vector<16x16xf32>
    %293 = arith.addf %26, %292 : vector<16x16xf32>
    %c50 = arith.constant 50 : index
    %294 = memref.load %arg2[%c50] : memref<98xf32, #tpu.memory_space<smem>>
    %295 = vector.extract_strided_slice %288 {offsets = [0, 1], sizes = [16, 16], strides = [1, 1]} : vector<16x128xf32> to vector<16x16xf32>
    %296 = vector.broadcast %294 : f32 to vector<16x16xf32>
    %297 = arith.mulf %296, %295 : vector<16x16xf32>
    %298 = arith.addf %293, %297 : vector<16x16xf32>
    %c51 = arith.constant 51 : index
    %299 = memref.load %arg2[%c51] : memref<98xf32, #tpu.memory_space<smem>>
    %300 = vector.extract_strided_slice %288 {offsets = [0, 2], sizes = [16, 16], strides = [1, 1]} : vector<16x128xf32> to vector<16x16xf32>
    %301 = vector.broadcast %299 : f32 to vector<16x16xf32>
    %302 = arith.mulf %301, %300 : vector<16x16xf32>
    %303 = arith.addf %298, %302 : vector<16x16xf32>
    %c52 = arith.constant 52 : index
    %304 = memref.load %arg2[%c52] : memref<98xf32, #tpu.memory_space<smem>>
    %305 = vector.extract_strided_slice %288 {offsets = [0, 3], sizes = [16, 16], strides = [1, 1]} : vector<16x128xf32> to vector<16x16xf32>
    %306 = vector.broadcast %304 : f32 to vector<16x16xf32>
    %307 = arith.mulf %306, %305 : vector<16x16xf32>
    %308 = arith.addf %303, %307 : vector<16x16xf32>
    %c53 = arith.constant 53 : index
    %309 = memref.load %arg2[%c53] : memref<98xf32, #tpu.memory_space<smem>>
    %310 = vector.extract_strided_slice %288 {offsets = [0, 4], sizes = [16, 16], strides = [1, 1]} : vector<16x128xf32> to vector<16x16xf32>
    %311 = vector.broadcast %309 : f32 to vector<16x16xf32>
    %312 = arith.mulf %311, %310 : vector<16x16xf32>
    %313 = arith.addf %308, %312 : vector<16x16xf32>
    %c54 = arith.constant 54 : index
    %314 = memref.load %arg2[%c54] : memref<98xf32, #tpu.memory_space<smem>>
    %315 = vector.extract_strided_slice %288 {offsets = [0, 5], sizes = [16, 16], strides = [1, 1]} : vector<16x128xf32> to vector<16x16xf32>
    %316 = vector.broadcast %314 : f32 to vector<16x16xf32>
    %317 = arith.mulf %316, %315 : vector<16x16xf32>
    %318 = arith.addf %313, %317 : vector<16x16xf32>
    %c55 = arith.constant 55 : index
    %319 = memref.load %arg2[%c55] : memref<98xf32, #tpu.memory_space<smem>>
    %320 = vector.extract_strided_slice %288 {offsets = [0, 6], sizes = [16, 16], strides = [1, 1]} : vector<16x128xf32> to vector<16x16xf32>
    %321 = vector.broadcast %319 : f32 to vector<16x16xf32>
    %322 = arith.mulf %321, %320 : vector<16x16xf32>
    %323 = arith.addf %318, %322 : vector<16x16xf32>
    %c1_54 = arith.constant 1 : index
    %c1_55 = arith.constant 1 : index
    %c0_56 = arith.constant 0 : index
    %324 = vector.load %arg5[%c1_54, %c1_55, %c0_56] : memref<2x22x128xf32, #tpu.memory_space<vmem>>, vector<1x16x128xf32>
    %325 = vector.shape_cast %324 : vector<1x16x128xf32> to vector<16x128xf32>
    %c56 = arith.constant 56 : index
    %326 = memref.load %arg2[%c56] : memref<98xf32, #tpu.memory_space<smem>>
    %327 = vector.extract_strided_slice %325 {offsets = [0, 0], sizes = [16, 16], strides = [1, 1]} : vector<16x128xf32> to vector<16x16xf32>
    %328 = vector.broadcast %326 : f32 to vector<16x16xf32>
    %329 = arith.mulf %328, %327 : vector<16x16xf32>
    %330 = arith.addf %27, %329 : vector<16x16xf32>
    %c57 = arith.constant 57 : index
    %331 = memref.load %arg2[%c57] : memref<98xf32, #tpu.memory_space<smem>>
    %332 = vector.extract_strided_slice %325 {offsets = [0, 1], sizes = [16, 16], strides = [1, 1]} : vector<16x128xf32> to vector<16x16xf32>
    %333 = vector.broadcast %331 : f32 to vector<16x16xf32>
    %334 = arith.mulf %333, %332 : vector<16x16xf32>
    %335 = arith.addf %330, %334 : vector<16x16xf32>
    %c58 = arith.constant 58 : index
    %336 = memref.load %arg2[%c58] : memref<98xf32, #tpu.memory_space<smem>>
    %337 = vector.extract_strided_slice %325 {offsets = [0, 2], sizes = [16, 16], strides = [1, 1]} : vector<16x128xf32> to vector<16x16xf32>
    %338 = vector.broadcast %336 : f32 to vector<16x16xf32>
    %339 = arith.mulf %338, %337 : vector<16x16xf32>
    %340 = arith.addf %335, %339 : vector<16x16xf32>
    %c59 = arith.constant 59 : index
    %341 = memref.load %arg2[%c59] : memref<98xf32, #tpu.memory_space<smem>>
    %342 = vector.extract_strided_slice %325 {offsets = [0, 3], sizes = [16, 16], strides = [1, 1]} : vector<16x128xf32> to vector<16x16xf32>
    %343 = vector.broadcast %341 : f32 to vector<16x16xf32>
    %344 = arith.mulf %343, %342 : vector<16x16xf32>
    %345 = arith.addf %340, %344 : vector<16x16xf32>
    %c60 = arith.constant 60 : index
    %346 = memref.load %arg2[%c60] : memref<98xf32, #tpu.memory_space<smem>>
    %347 = vector.extract_strided_slice %325 {offsets = [0, 4], sizes = [16, 16], strides = [1, 1]} : vector<16x128xf32> to vector<16x16xf32>
    %348 = vector.broadcast %346 : f32 to vector<16x16xf32>
    %349 = arith.mulf %348, %347 : vector<16x16xf32>
    %350 = arith.addf %345, %349 : vector<16x16xf32>
    %c61 = arith.constant 61 : index
    %351 = memref.load %arg2[%c61] : memref<98xf32, #tpu.memory_space<smem>>
    %352 = vector.extract_strided_slice %325 {offsets = [0, 5], sizes = [16, 16], strides = [1, 1]} : vector<16x128xf32> to vector<16x16xf32>
    %353 = vector.broadcast %351 : f32 to vector<16x16xf32>
    %354 = arith.mulf %353, %352 : vector<16x16xf32>
    %355 = arith.addf %350, %354 : vector<16x16xf32>
    %c62 = arith.constant 62 : index
    %356 = memref.load %arg2[%c62] : memref<98xf32, #tpu.memory_space<smem>>
    %357 = vector.extract_strided_slice %325 {offsets = [0, 6], sizes = [16, 16], strides = [1, 1]} : vector<16x128xf32> to vector<16x16xf32>
    %358 = vector.broadcast %356 : f32 to vector<16x16xf32>
    %359 = arith.mulf %358, %357 : vector<16x16xf32>
    %360 = arith.addf %355, %359 : vector<16x16xf32>
    %c1_57 = arith.constant 1 : index
    %c2_58 = arith.constant 2 : index
    %c0_59 = arith.constant 0 : index
    %361 = vector.load %arg5[%c1_57, %c2_58, %c0_59] : memref<2x22x128xf32, #tpu.memory_space<vmem>>, vector<1x16x128xf32>
    %362 = vector.shape_cast %361 : vector<1x16x128xf32> to vector<16x128xf32>
    %c63 = arith.constant 63 : index
    %363 = memref.load %arg2[%c63] : memref<98xf32, #tpu.memory_space<smem>>
    %364 = vector.extract_strided_slice %362 {offsets = [0, 0], sizes = [16, 16], strides = [1, 1]} : vector<16x128xf32> to vector<16x16xf32>
    %365 = vector.broadcast %363 : f32 to vector<16x16xf32>
    %366 = arith.mulf %365, %364 : vector<16x16xf32>
    %367 = arith.addf %323, %366 : vector<16x16xf32>
    %c64 = arith.constant 64 : index
    %368 = memref.load %arg2[%c64] : memref<98xf32, #tpu.memory_space<smem>>
    %369 = vector.extract_strided_slice %362 {offsets = [0, 1], sizes = [16, 16], strides = [1, 1]} : vector<16x128xf32> to vector<16x16xf32>
    %370 = vector.broadcast %368 : f32 to vector<16x16xf32>
    %371 = arith.mulf %370, %369 : vector<16x16xf32>
    %372 = arith.addf %367, %371 : vector<16x16xf32>
    %c65 = arith.constant 65 : index
    %373 = memref.load %arg2[%c65] : memref<98xf32, #tpu.memory_space<smem>>
    %374 = vector.extract_strided_slice %362 {offsets = [0, 2], sizes = [16, 16], strides = [1, 1]} : vector<16x128xf32> to vector<16x16xf32>
    %375 = vector.broadcast %373 : f32 to vector<16x16xf32>
    %376 = arith.mulf %375, %374 : vector<16x16xf32>
    %377 = arith.addf %372, %376 : vector<16x16xf32>
    %c66 = arith.constant 66 : index
    %378 = memref.load %arg2[%c66] : memref<98xf32, #tpu.memory_space<smem>>
    %379 = vector.extract_strided_slice %362 {offsets = [0, 3], sizes = [16, 16], strides = [1, 1]} : vector<16x128xf32> to vector<16x16xf32>
    %380 = vector.broadcast %378 : f32 to vector<16x16xf32>
    %381 = arith.mulf %380, %379 : vector<16x16xf32>
    %382 = arith.addf %377, %381 : vector<16x16xf32>
    %c67 = arith.constant 67 : index
    %383 = memref.load %arg2[%c67] : memref<98xf32, #tpu.memory_space<smem>>
    %384 = vector.extract_strided_slice %362 {offsets = [0, 4], sizes = [16, 16], strides = [1, 1]} : vector<16x128xf32> to vector<16x16xf32>
    %385 = vector.broadcast %383 : f32 to vector<16x16xf32>
    %386 = arith.mulf %385, %384 : vector<16x16xf32>
    %387 = arith.addf %382, %386 : vector<16x16xf32>
    %c68 = arith.constant 68 : index
    %388 = memref.load %arg2[%c68] : memref<98xf32, #tpu.memory_space<smem>>
    %389 = vector.extract_strided_slice %362 {offsets = [0, 5], sizes = [16, 16], strides = [1, 1]} : vector<16x128xf32> to vector<16x16xf32>
    %390 = vector.broadcast %388 : f32 to vector<16x16xf32>
    %391 = arith.mulf %390, %389 : vector<16x16xf32>
    %392 = arith.addf %387, %391 : vector<16x16xf32>
    %c69 = arith.constant 69 : index
    %393 = memref.load %arg2[%c69] : memref<98xf32, #tpu.memory_space<smem>>
    %394 = vector.extract_strided_slice %362 {offsets = [0, 6], sizes = [16, 16], strides = [1, 1]} : vector<16x128xf32> to vector<16x16xf32>
    %395 = vector.broadcast %393 : f32 to vector<16x16xf32>
    %396 = arith.mulf %395, %394 : vector<16x16xf32>
    %397 = arith.addf %392, %396 : vector<16x16xf32>
    %c1_60 = arith.constant 1 : index
    %c3_61 = arith.constant 3 : index
    %c0_62 = arith.constant 0 : index
    %398 = vector.load %arg5[%c1_60, %c3_61, %c0_62] : memref<2x22x128xf32, #tpu.memory_space<vmem>>, vector<1x16x128xf32>
    %399 = vector.shape_cast %398 : vector<1x16x128xf32> to vector<16x128xf32>
    %c70 = arith.constant 70 : index
    %400 = memref.load %arg2[%c70] : memref<98xf32, #tpu.memory_space<smem>>
    %401 = vector.extract_strided_slice %399 {offsets = [0, 0], sizes = [16, 16], strides = [1, 1]} : vector<16x128xf32> to vector<16x16xf32>
    %402 = vector.broadcast %400 : f32 to vector<16x16xf32>
    %403 = arith.mulf %402, %401 : vector<16x16xf32>
    %404 = arith.addf %360, %403 : vector<16x16xf32>
    %c71 = arith.constant 71 : index
    %405 = memref.load %arg2[%c71] : memref<98xf32, #tpu.memory_space<smem>>
    %406 = vector.extract_strided_slice %399 {offsets = [0, 1], sizes = [16, 16], strides = [1, 1]} : vector<16x128xf32> to vector<16x16xf32>
    %407 = vector.broadcast %405 : f32 to vector<16x16xf32>
    %408 = arith.mulf %407, %406 : vector<16x16xf32>
    %409 = arith.addf %404, %408 : vector<16x16xf32>
    %c72 = arith.constant 72 : index
    %410 = memref.load %arg2[%c72] : memref<98xf32, #tpu.memory_space<smem>>
    %411 = vector.extract_strided_slice %399 {offsets = [0, 2], sizes = [16, 16], strides = [1, 1]} : vector<16x128xf32> to vector<16x16xf32>
    %412 = vector.broadcast %410 : f32 to vector<16x16xf32>
    %413 = arith.mulf %412, %411 : vector<16x16xf32>
    %414 = arith.addf %409, %413 : vector<16x16xf32>
    %c73 = arith.constant 73 : index
    %415 = memref.load %arg2[%c73] : memref<98xf32, #tpu.memory_space<smem>>
    %416 = vector.extract_strided_slice %399 {offsets = [0, 3], sizes = [16, 16], strides = [1, 1]} : vector<16x128xf32> to vector<16x16xf32>
    %417 = vector.broadcast %415 : f32 to vector<16x16xf32>
    %418 = arith.mulf %417, %416 : vector<16x16xf32>
    %419 = arith.addf %414, %418 : vector<16x16xf32>
    %c74 = arith.constant 74 : index
    %420 = memref.load %arg2[%c74] : memref<98xf32, #tpu.memory_space<smem>>
    %421 = vector.extract_strided_slice %399 {offsets = [0, 4], sizes = [16, 16], strides = [1, 1]} : vector<16x128xf32> to vector<16x16xf32>
    %422 = vector.broadcast %420 : f32 to vector<16x16xf32>
    %423 = arith.mulf %422, %421 : vector<16x16xf32>
    %424 = arith.addf %419, %423 : vector<16x16xf32>
    %c75 = arith.constant 75 : index
    %425 = memref.load %arg2[%c75] : memref<98xf32, #tpu.memory_space<smem>>
    %426 = vector.extract_strided_slice %399 {offsets = [0, 5], sizes = [16, 16], strides = [1, 1]} : vector<16x128xf32> to vector<16x16xf32>
    %427 = vector.broadcast %425 : f32 to vector<16x16xf32>
    %428 = arith.mulf %427, %426 : vector<16x16xf32>
    %429 = arith.addf %424, %428 : vector<16x16xf32>
    %c76 = arith.constant 76 : index
    %430 = memref.load %arg2[%c76] : memref<98xf32, #tpu.memory_space<smem>>
    %431 = vector.extract_strided_slice %399 {offsets = [0, 6], sizes = [16, 16], strides = [1, 1]} : vector<16x128xf32> to vector<16x16xf32>
    %432 = vector.broadcast %430 : f32 to vector<16x16xf32>
    %433 = arith.mulf %432, %431 : vector<16x16xf32>
    %434 = arith.addf %429, %433 : vector<16x16xf32>
    %c1_63 = arith.constant 1 : index
    %c4_64 = arith.constant 4 : index
    %c0_65 = arith.constant 0 : index
    %435 = vector.load %arg5[%c1_63, %c4_64, %c0_65] : memref<2x22x128xf32, #tpu.memory_space<vmem>>, vector<1x16x128xf32>
    %436 = vector.shape_cast %435 : vector<1x16x128xf32> to vector<16x128xf32>
    %c77 = arith.constant 77 : index
    %437 = memref.load %arg2[%c77] : memref<98xf32, #tpu.memory_space<smem>>
    %438 = vector.extract_strided_slice %436 {offsets = [0, 0], sizes = [16, 16], strides = [1, 1]} : vector<16x128xf32> to vector<16x16xf32>
    %439 = vector.broadcast %437 : f32 to vector<16x16xf32>
    %440 = arith.mulf %439, %438 : vector<16x16xf32>
    %441 = arith.addf %397, %440 : vector<16x16xf32>
    %c78 = arith.constant 78 : index
    %442 = memref.load %arg2[%c78] : memref<98xf32, #tpu.memory_space<smem>>
    %443 = vector.extract_strided_slice %436 {offsets = [0, 1], sizes = [16, 16], strides = [1, 1]} : vector<16x128xf32> to vector<16x16xf32>
    %444 = vector.broadcast %442 : f32 to vector<16x16xf32>
    %445 = arith.mulf %444, %443 : vector<16x16xf32>
    %446 = arith.addf %441, %445 : vector<16x16xf32>
    %c79 = arith.constant 79 : index
    %447 = memref.load %arg2[%c79] : memref<98xf32, #tpu.memory_space<smem>>
    %448 = vector.extract_strided_slice %436 {offsets = [0, 2], sizes = [16, 16], strides = [1, 1]} : vector<16x128xf32> to vector<16x16xf32>
    %449 = vector.broadcast %447 : f32 to vector<16x16xf32>
    %450 = arith.mulf %449, %448 : vector<16x16xf32>
    %451 = arith.addf %446, %450 : vector<16x16xf32>
    %c80 = arith.constant 80 : index
    %452 = memref.load %arg2[%c80] : memref<98xf32, #tpu.memory_space<smem>>
    %453 = vector.extract_strided_slice %436 {offsets = [0, 3], sizes = [16, 16], strides = [1, 1]} : vector<16x128xf32> to vector<16x16xf32>
    %454 = vector.broadcast %452 : f32 to vector<16x16xf32>
    %455 = arith.mulf %454, %453 : vector<16x16xf32>
    %456 = arith.addf %451, %455 : vector<16x16xf32>
    %c81 = arith.constant 81 : index
    %457 = memref.load %arg2[%c81] : memref<98xf32, #tpu.memory_space<smem>>
    %458 = vector.extract_strided_slice %436 {offsets = [0, 4], sizes = [16, 16], strides = [1, 1]} : vector<16x128xf32> to vector<16x16xf32>
    %459 = vector.broadcast %457 : f32 to vector<16x16xf32>
    %460 = arith.mulf %459, %458 : vector<16x16xf32>
    %461 = arith.addf %456, %460 : vector<16x16xf32>
    %c82 = arith.constant 82 : index
    %462 = memref.load %arg2[%c82] : memref<98xf32, #tpu.memory_space<smem>>
    %463 = vector.extract_strided_slice %436 {offsets = [0, 5], sizes = [16, 16], strides = [1, 1]} : vector<16x128xf32> to vector<16x16xf32>
    %464 = vector.broadcast %462 : f32 to vector<16x16xf32>
    %465 = arith.mulf %464, %463 : vector<16x16xf32>
    %466 = arith.addf %461, %465 : vector<16x16xf32>
    %c83 = arith.constant 83 : index
    %467 = memref.load %arg2[%c83] : memref<98xf32, #tpu.memory_space<smem>>
    %468 = vector.extract_strided_slice %436 {offsets = [0, 6], sizes = [16, 16], strides = [1, 1]} : vector<16x128xf32> to vector<16x16xf32>
    %469 = vector.broadcast %467 : f32 to vector<16x16xf32>
    %470 = arith.mulf %469, %468 : vector<16x16xf32>
    %471 = arith.addf %466, %470 : vector<16x16xf32>
    %c1_66 = arith.constant 1 : index
    %c5_67 = arith.constant 5 : index
    %c0_68 = arith.constant 0 : index
    %472 = vector.load %arg5[%c1_66, %c5_67, %c0_68] : memref<2x22x128xf32, #tpu.memory_space<vmem>>, vector<1x16x128xf32>
    %473 = vector.shape_cast %472 : vector<1x16x128xf32> to vector<16x128xf32>
    %c84 = arith.constant 84 : index
    %474 = memref.load %arg2[%c84] : memref<98xf32, #tpu.memory_space<smem>>
    %475 = vector.extract_strided_slice %473 {offsets = [0, 0], sizes = [16, 16], strides = [1, 1]} : vector<16x128xf32> to vector<16x16xf32>
    %476 = vector.broadcast %474 : f32 to vector<16x16xf32>
    %477 = arith.mulf %476, %475 : vector<16x16xf32>
    %478 = arith.addf %434, %477 : vector<16x16xf32>
    %c85 = arith.constant 85 : index
    %479 = memref.load %arg2[%c85] : memref<98xf32, #tpu.memory_space<smem>>
    %480 = vector.extract_strided_slice %473 {offsets = [0, 1], sizes = [16, 16], strides = [1, 1]} : vector<16x128xf32> to vector<16x16xf32>
    %481 = vector.broadcast %479 : f32 to vector<16x16xf32>
    %482 = arith.mulf %481, %480 : vector<16x16xf32>
    %483 = arith.addf %478, %482 : vector<16x16xf32>
    %c86 = arith.constant 86 : index
    %484 = memref.load %arg2[%c86] : memref<98xf32, #tpu.memory_space<smem>>
    %485 = vector.extract_strided_slice %473 {offsets = [0, 2], sizes = [16, 16], strides = [1, 1]} : vector<16x128xf32> to vector<16x16xf32>
    %486 = vector.broadcast %484 : f32 to vector<16x16xf32>
    %487 = arith.mulf %486, %485 : vector<16x16xf32>
    %488 = arith.addf %483, %487 : vector<16x16xf32>
    %c87 = arith.constant 87 : index
    %489 = memref.load %arg2[%c87] : memref<98xf32, #tpu.memory_space<smem>>
    %490 = vector.extract_strided_slice %473 {offsets = [0, 3], sizes = [16, 16], strides = [1, 1]} : vector<16x128xf32> to vector<16x16xf32>
    %491 = vector.broadcast %489 : f32 to vector<16x16xf32>
    %492 = arith.mulf %491, %490 : vector<16x16xf32>
    %493 = arith.addf %488, %492 : vector<16x16xf32>
    %c88 = arith.constant 88 : index
    %494 = memref.load %arg2[%c88] : memref<98xf32, #tpu.memory_space<smem>>
    %495 = vector.extract_strided_slice %473 {offsets = [0, 4], sizes = [16, 16], strides = [1, 1]} : vector<16x128xf32> to vector<16x16xf32>
    %496 = vector.broadcast %494 : f32 to vector<16x16xf32>
    %497 = arith.mulf %496, %495 : vector<16x16xf32>
    %498 = arith.addf %493, %497 : vector<16x16xf32>
    %c89 = arith.constant 89 : index
    %499 = memref.load %arg2[%c89] : memref<98xf32, #tpu.memory_space<smem>>
    %500 = vector.extract_strided_slice %473 {offsets = [0, 5], sizes = [16, 16], strides = [1, 1]} : vector<16x128xf32> to vector<16x16xf32>
    %501 = vector.broadcast %499 : f32 to vector<16x16xf32>
    %502 = arith.mulf %501, %500 : vector<16x16xf32>
    %503 = arith.addf %498, %502 : vector<16x16xf32>
    %c90 = arith.constant 90 : index
    %504 = memref.load %arg2[%c90] : memref<98xf32, #tpu.memory_space<smem>>
    %505 = vector.extract_strided_slice %473 {offsets = [0, 6], sizes = [16, 16], strides = [1, 1]} : vector<16x128xf32> to vector<16x16xf32>
    %506 = vector.broadcast %504 : f32 to vector<16x16xf32>
    %507 = arith.mulf %506, %505 : vector<16x16xf32>
    %508 = arith.addf %503, %507 : vector<16x16xf32>
    %c1_69 = arith.constant 1 : index
    %c6_70 = arith.constant 6 : index
    %c0_71 = arith.constant 0 : index
    %509 = vector.load %arg5[%c1_69, %c6_70, %c0_71] : memref<2x22x128xf32, #tpu.memory_space<vmem>>, vector<1x16x128xf32>
    %510 = vector.shape_cast %509 : vector<1x16x128xf32> to vector<16x128xf32>
    %c91 = arith.constant 91 : index
    %511 = memref.load %arg2[%c91] : memref<98xf32, #tpu.memory_space<smem>>
    %512 = vector.extract_strided_slice %510 {offsets = [0, 0], sizes = [16, 16], strides = [1, 1]} : vector<16x128xf32> to vector<16x16xf32>
    %513 = vector.broadcast %511 : f32 to vector<16x16xf32>
    %514 = arith.mulf %513, %512 : vector<16x16xf32>
    %515 = arith.addf %471, %514 : vector<16x16xf32>
    %c92 = arith.constant 92 : index
    %516 = memref.load %arg2[%c92] : memref<98xf32, #tpu.memory_space<smem>>
    %517 = vector.extract_strided_slice %510 {offsets = [0, 1], sizes = [16, 16], strides = [1, 1]} : vector<16x128xf32> to vector<16x16xf32>
    %518 = vector.broadcast %516 : f32 to vector<16x16xf32>
    %519 = arith.mulf %518, %517 : vector<16x16xf32>
    %520 = arith.addf %515, %519 : vector<16x16xf32>
    %c93 = arith.constant 93 : index
    %521 = memref.load %arg2[%c93] : memref<98xf32, #tpu.memory_space<smem>>
    %522 = vector.extract_strided_slice %510 {offsets = [0, 2], sizes = [16, 16], strides = [1, 1]} : vector<16x128xf32> to vector<16x16xf32>
    %523 = vector.broadcast %521 : f32 to vector<16x16xf32>
    %524 = arith.mulf %523, %522 : vector<16x16xf32>
    %525 = arith.addf %520, %524 : vector<16x16xf32>
    %c94 = arith.constant 94 : index
    %526 = memref.load %arg2[%c94] : memref<98xf32, #tpu.memory_space<smem>>
    %527 = vector.extract_strided_slice %510 {offsets = [0, 3], sizes = [16, 16], strides = [1, 1]} : vector<16x128xf32> to vector<16x16xf32>
    %528 = vector.broadcast %526 : f32 to vector<16x16xf32>
    %529 = arith.mulf %528, %527 : vector<16x16xf32>
    %530 = arith.addf %525, %529 : vector<16x16xf32>
    %c95 = arith.constant 95 : index
    %531 = memref.load %arg2[%c95] : memref<98xf32, #tpu.memory_space<smem>>
    %532 = vector.extract_strided_slice %510 {offsets = [0, 4], sizes = [16, 16], strides = [1, 1]} : vector<16x128xf32> to vector<16x16xf32>
    %533 = vector.broadcast %531 : f32 to vector<16x16xf32>
    %534 = arith.mulf %533, %532 : vector<16x16xf32>
    %535 = arith.addf %530, %534 : vector<16x16xf32>
    %c96 = arith.constant 96 : index
    %536 = memref.load %arg2[%c96] : memref<98xf32, #tpu.memory_space<smem>>
    %537 = vector.extract_strided_slice %510 {offsets = [0, 5], sizes = [16, 16], strides = [1, 1]} : vector<16x128xf32> to vector<16x16xf32>
    %538 = vector.broadcast %536 : f32 to vector<16x16xf32>
    %539 = arith.mulf %538, %537 : vector<16x16xf32>
    %540 = arith.addf %535, %539 : vector<16x16xf32>
    %c97 = arith.constant 97 : index
    %541 = memref.load %arg2[%c97] : memref<98xf32, #tpu.memory_space<smem>>
    %542 = vector.extract_strided_slice %510 {offsets = [0, 6], sizes = [16, 16], strides = [1, 1]} : vector<16x128xf32> to vector<16x16xf32>
    %543 = vector.broadcast %541 : f32 to vector<16x16xf32>
    %544 = arith.mulf %543, %542 : vector<16x16xf32>
    %545 = arith.addf %540, %544 : vector<16x16xf32>
    %546 = arith.addf %286, %249 : vector<16x16xf32>
    %547 = arith.addf %545, %508 : vector<16x16xf32>
    %548 = arith.addf %546, %547 : vector<16x16xf32>
    %c0_72 = arith.constant 0 : index
    %549 = memref.load %arg3[%c0_72] : memref<1xf32, #tpu.memory_space<smem>>
    %550 = vector.broadcast %549 : f32 to vector<16x16xf32>
    %551 = arith.addf %548, %550 : vector<16x16xf32>
    %c0_73 = arith.constant 0 : index
    %c0_74 = arith.constant 0 : index
    %c0_75 = arith.constant 0 : index
    %c0_76 = arith.constant 0 : index
    %552 = vector.load %arg4[%c0_73, %c0_74, %c0_75, %c0_76] : memref<1x1x16x16xf32, #tpu.memory_space<vmem>>, vector<1x1x16x16xf32>
    %553 = vector.shape_cast %552 : vector<1x1x16x16xf32> to vector<16x16xf32>
    %554 = vector.shape_cast %551 : vector<16x16xf32> to vector<1x1x16x16xf32>
    tpu.vector_store %arg4[%c0_73, %c0_74, %c0_75, %c0_76], %554 {strides = array<i32>} : memref<1x1x16x16xf32, #tpu.memory_space<vmem>>, vector<1x1x16x16xf32>,
    return
  }
  func.func @transform_0(%arg0: i32) -> (i32, i32, i32, i32) {
    %c0_i32 = arith.constant 0 : i32
    %c0_i32_0 = arith.constant 0 : i32
    %c0_i32_1 = arith.constant 0 : i32
    %c0_i32_2 = arith.constant 0 : i32
    return %arg0, %c0_i32, %c0_i32_0, %c0_i32_1 : i32, i32, i32, i32
  }
  func.func @transform_1(%arg0: i32) -> i32 {
    %c0_i32 = arith.constant 0 : i32
    %c0_i32_0 = arith.constant 0 : i32
    return %c0_i32 : i32
  }
  func.func @transform_2(%arg0: i32) -> i32 {
    %c0_i32 = arith.constant 0 : i32
    %c0_i32_0 = arith.constant 0 : i32
    return %c0_i32 : i32
  }
  func.func @transform_3(%arg0: i32) -> (i32, i32, i32, i32) {
    %c0_i32 = arith.constant 0 : i32
    %c0_i32_0 = arith.constant 0 : i32
    %c0_i32_1 = arith.constant 0 : i32
    %c0_i32_2 = arith.constant 0 : i32
    return %arg0, %c0_i32, %c0_i32_0, %c0_i32_1 : i32, i32, i32, i32
  }
}

</mosaic_0001>

<llo_original>
// kernel: tpu_custom_call.1
$region0: #{tpu_custom_call.1}
  #allocation0 [shape = 'u32[]', space=smem, size = 0x4, offset = 0x4, fixed_abs, tag = 'smem constant byte address 0x4 - core index']
  #allocation1 [shape = 'u32[72,128]{1,0:T(1,128)}', space=vmem, size = 0x9000, scoped, tag = 'internal scratch']
  #allocation2 [shape = 'f32[2,22,128]{2,1,0:T(8,128)}', space=vmem, size = 0x6000, scoped, tag = 'scratch operand']
  #allocation3 [shape = 'f32[1]{0:T(128)S(6)}', space=smem, size = 0x200, scoped, tag = 'scoped memory for tpu_custom_call.1']
  %s0 = inlined_call_operand.hbm [shape: f32[2,4,16,16], index: 0, kind: input, shape index: {}]
  %s1 = inlined_call_operand.vmem [shape: f32[98], index: 1, kind: input, shape index: {}]
  %s2 = inlined_call_operand.<no memory space> [shape: f32[1], index: 2, kind: input, shape index: {}]
  %s3 = inlined_call_operand.hbm [shape: f32[2,1,16,16], index: 3, kind: output, shape index: {}]
  %s4 = sld [smem:[#allocation0]]
  $region53: #{tpu_custom_call.1} parent=0
    _
  %s6 = ssub.s32 1, %s4
  %s7 = scalar_select 0, %s6, %s4
  %8 = sst [smem:[#allocation3]] %s2
  $region1: #{tpu_custom_call.1} parent=0
    #allocation4 [shape = 'u8[65536]{0}', space=vmem, size = 0x10000, scoped, tag = 'input window, operand 0']
    #allocation5 [shape = 's32[2]{0}', space=sflag, size = 0x8, scoped, tag = 'scoped memory for tpu_custom_call.1']
    #allocation6 [shape = 's32[2]{0}', space=sflag, size = 0x8, scoped, tag = 'scoped memory for tpu_custom_call.1']
    #allocation7 [shape = 's32[2]{0}', space=sflag, size = 0x8, scoped, tag = 'scoped memory for tpu_custom_call.1']
    #allocation8 [shape = 'u8[512]{0}', space=smem, size = 0x200, scoped, tag = 'input window, operand 1, single buffered']
    #allocation9 [shape = 'u8[16384]{0}', space=vmem, size = 0x4000, scoped, tag = 'output window, operand 0']
    %9 = vsyncpa [#allocation5], 0
    %s10 = scalar_lea.sflag [#allocation5], 1
    %11 = vsyncpa %s10, 0
    %12 = vsyncpa [#allocation7], 0
    %13 = vsyncpa [#allocation6], 0
    %s14 = scalar_lea.sflag [#allocation6], 1
    %15 = vsyncpa %s14, 0
    loop: start=0, step=1, limit=4
    $region2: #{tpu_custom_call.1} parent=1 // loop_pre_header
      _
    $region3: #{tpu_custom_call.1} parent=1 // loop_header
      %s17 = sphi 0, %s21
      %p18 = scmp.ge.s32.totalorder %s17, 4
      %s27 = sphi 0, %s29
      %s30 = sphi 0, %s27
      %s31 = sphi 0, %s30
      %s47 = sphi 0, %s31
      %s51 = sphi 0, %s51
      %s53 = sphi 0, %s51
      %s54 = sphi 0, %s53
      %s68 = sphi 0, %s54
      %s72 = sphi 0, %s72
      %s74 = sphi 0, %s72
      %s75 = sphi 0, %s74
      %s89 = sphi 0, %s75
      %s95 = sphi 0, %s97
      %s98 = sphi 0, %s95
      %s99 = sphi 0, %s98
      %s115 = sphi 0, %s99
    $region4: #{tpu_custom_call.1} parent=1 // loop_header_branch
      %20 = sbr.rel (%p18) target = $region8
    $region5: #{tpu_custom_call.1} parent=1 // loop_body
      %s22 = ssub.s32 %s17, 1
      %s23 = ssub.s32 %s17, 2
      %s24 = sadd.s32 %s17, 1
      %s25 = ssub.s32 %s17, %s24
      %p26 = scmp.eq.s32.totalorder %s25, 0
      %s28 = sadd.s32 %s27, 1
      %s29 = scalar_select %p26, %s27, %s28
      %p32 = pneg %p26
      %p33 = scmp.eq.s32.totalorder %s17, 1
      %p34 = por %p32, %p33
      %p35 = scmp.ne.s32.totalorder %s27, %s30
      %p36 = scmp.eq.s32.totalorder %s17, 0
      %p37 = por %p35, %p36
      %p38 = scmp.ne.s32.totalorder %s27, %s30
      %p39 = scmp.eq.s32.totalorder %s22, 1
      %p40 = por %p38, %p39
      %p41 = scmp.ne.s32.totalorder %s30, %s31
      %p42 = scmp.eq.s32.totalorder %s22, 0
      %p43 = por %p41, %p42
      %p44 = scmp.ne.s32.totalorder %s30, %s31
      %p45 = scmp.eq.s32.totalorder %s23, 1
      %p46 = por %p44, %p45
      %p48 = scmp.ne.s32.totalorder %s31, %s47
      %p49 = scmp.eq.s32.totalorder %s23, 0
      %p50 = por %p48, %p49
      %s52 = sadd.s32 %s51, 1
      %p55 = scmp.eq.s32.totalorder %s17, 1
      %p56 = scmp.ne.s32.totalorder %s51, %s53
      %p57 = scmp.eq.s32.totalorder %s17, 0
      %p58 = por %p56, %p57
      %p59 = scmp.ne.s32.totalorder %s51, %s53
      %p60 = scmp.eq.s32.totalorder %s22, 1
      %p61 = por %p59, %p60
      %p62 = scmp.ne.s32.totalorder %s53, %s54
      %p63 = scmp.eq.s32.totalorder %s22, 0
      %p64 = por %p62, %p63
      %p65 = scmp.ne.s32.totalorder %s53, %s54
      %p66 = scmp.eq.s32.totalorder %s23, 1
      %p67 = por %p65, %p66
      %p69 = scmp.ne.s32.totalorder %s54, %s68
      %p70 = scmp.eq.s32.totalorder %s23, 0
      %p71 = por %p69, %p70
      %s73 = sadd.s32 %s72, 1
      %p76 = scmp.eq.s32.totalorder %s17, 1
      %p77 = scmp.ne.s32.totalorder %s72, %s74
      %p78 = scmp.eq.s32.totalorder %s17, 0
      %p79 = por %p77, %p78
      %p80 = scmp.ne.s32.totalorder %s72, %s74
      %p81 = scmp.eq.s32.totalorder %s22, 1
      %p82 = por %p80, %p81
      %p83 = scmp.ne.s32.totalorder %s74, %s75
      %p84 = scmp.eq.s32.totalorder %s22, 0
      %p85 = por %p83, %p84
      %p86 = scmp.ne.s32.totalorder %s74, %s75
      %p87 = scmp.eq.s32.totalorder %s23, 1
      %p88 = por %p86, %p87
      %p90 = scmp.ne.s32.totalorder %s75, %s89
      %p91 = scmp.eq.s32.totalorder %s23, 0
      %p92 = por %p90, %p91
      %s93 = ssub.s32 %s17, %s24
      %p94 = scmp.eq.s32.totalorder %s93, 0
      %s96 = sadd.s32 %s95, 1
      %s97 = scalar_select %p94, %s95, %s96
      %p100 = pneg %p94
      %p101 = scmp.eq.s32.totalorder %s17, 1
      %p102 = por %p100, %p101
      %p103 = scmp.ne.s32.totalorder %s95, %s98
      %p104 = scmp.eq.s32.totalorder %s17, 0
      %p105 = por %p103, %p104
      %p106 = scmp.ne.s32.totalorder %s95, %s98
      %p107 = scmp.eq.s32.totalorder %s22, 1
      %p108 = por %p106, %p107
      %p109 = scmp.ne.s32.totalorder %s98, %s99
      %p110 = scmp.eq.s32.totalorder %s22, 0
      %p111 = por %p109, %p110
      %p112 = scmp.ne.s32.totalorder %s98, %s99
      %p113 = scmp.eq.s32.totalorder %s23, 1
      %p114 = por %p112, %p113
      %p116 = scmp.ne.s32.totalorder %s99, %s115
      %p117 = scmp.eq.s32.totalorder %s23, 0
      %p118 = por %p116, %p117
      %p119 = scmp.le.s32.totalorder 1, %s17
      %p120 = scmp.lt.s32.totalorder %s17, 3
      %p121 = pnand %p119, %p120
      %p122 = pneg %p121
      // Predicated region
      $region9: #{tpu_custom_call.1} parent=5 // pred_check
        _
      $region10: #{tpu_custom_call.1} parent=5 // pred_check_branch
        %124 = sbr.rel (%p121) target = $region12
      $region11: #{tpu_custom_call.1} parent=5 // pred_region
        %s125 = ssub.s32 %s17, 1
        // Predicated region
        $region13: #{tpu_custom_call.1} parent=11 // pred_check
          %p126 = pneg %p64
        $region14: #{tpu_custom_call.1} parent=11 // pred_check_branch
          %128 = sbr.rel (%p126) target = $region16
        $region15: #{tpu_custom_call.1} parent=11 // pred_region
          %130 = vsyncadd [#allocation7], 0
          %s132 = sshll.u32 %s1, 4
          %s133 = int_to_ptr.vmem [resolvable:$true] %s132
          %135 = dma.vmem_to_smem %s133, 16, [#allocation8], [#allocation7]
        $region16: #{tpu_custom_call.1} parent=11 // pred_fallthru
          _
        // Predicated region
        $region17: #{tpu_custom_call.1} parent=11 // pred_check
          %p136 = pneg %p85
        $region18: #{tpu_custom_call.1} parent=11 // pred_check_branch
          %138 = sbr.rel (%p136) target = $region20
        $region19: #{tpu_custom_call.1} parent=11 // pred_region
          _
        $region20: #{tpu_custom_call.1} parent=11 // pred_fallthru
          _
      $region12: #{tpu_custom_call.1} parent=5 // pred_fallthru
        _
      %p139 = scmp.lt.s32.totalorder %s17, 2
      // Predicated region
      $region21: #{tpu_custom_call.1} parent=5 // pred_check
        %p140 = pneg %p139
      $region22: #{tpu_custom_call.1} parent=5 // pred_check_branch
        %142 = sbr.rel (%p140) target = $region24
      $region23: #{tpu_custom_call.1} parent=5 // pred_region
        // Predicated region
        $region25: #{tpu_custom_call.1} parent=23 // pred_check
          %p143 = pneg %p37
        $region26: #{tpu_custom_call.1} parent=23 // pred_check_branch
          %145 = sbr.rel (%p143) target = $region28
        $region27: #{tpu_custom_call.1} parent=23 // pred_region
          %s146 = sand.u32 %s27, 1
          %s147 = scalar_lea.sflag [#allocation5], %s146
          %s148 = sand.u32 %s27, 1
          %s149 = smul.addr %s148, 64
          %s150 = scalar_lea.vmem [#allocation4], %s149
          %152 = vsyncadd %s147, 0
          %s153 = smul.addr %s17, 8
          %s154 = smul.addr %s153, 8
          %s155 = scalar_lea.hbm %s0, %s154
          %s156 = sshll.u32 %s155, 4
          %s157 = int_to_ptr.hbm [resolvable:$true] %s156
          %s158 = sshll.u32 %s150, 4
          %s159 = int_to_ptr.vmem [resolvable:$true] %s158
          %164 = dma.hbm_to_vmem [thread:$0]  %s157, 1024, %s159, %s147, 128, 128, 8
        $region28: #{tpu_custom_call.1} parent=23 // pred_fallthru
          _
      $region24: #{tpu_custom_call.1} parent=5 // pred_fallthru
        _
      %p165 = scmp.le.s32.totalorder 1, %s17
      %p166 = scmp.lt.s32.totalorder %s17, 3
      %p167 = pnand %p165, %p166
      %p168 = pneg %p167
      // Predicated region
      $region29: #{tpu_custom_call.1} parent=5 // pred_check
        _
      $region30: #{tpu_custom_call.1} parent=5 // pred_check_branch
        %170 = sbr.rel (%p167) target = $region32
      $region31: #{tpu_custom_call.1} parent=5 // pred_region
        %s171 = ssub.s32 %s17, 1
        %s172 = sand.u32 %s30, 1
        %s173 = scalar_lea.sflag [#allocation5], %s172
        %s174 = sand.u32 %s30, 1
        %s175 = smul.addr %s174, 64
        %s176 = scalar_lea.vmem [#allocation4], %s175
        // Predicated region
        $region33: #{tpu_custom_call.1} parent=31 // pred_check
          %p177 = pneg %p43
        $region34: #{tpu_custom_call.1} parent=31 // pred_check_branch
          %179 = sbr.rel (%p177) target = $region36
        $region35: #{tpu_custom_call.1} parent=31 // pred_region
          %181 = dma.done %s173, 1024
        $region36: #{tpu_custom_call.1} parent=31 // pred_fallthru
          _
        // Predicated region
        $region37: #{tpu_custom_call.1} parent=31 // pred_check
          %p182 = pneg %p64
        $region38: #{tpu_custom_call.1} parent=31 // pred_check_branch
          %184 = sbr.rel (%p182) target = $region40
        $region39: #{tpu_custom_call.1} parent=31 // pred_region
          %186 = dma.done [#allocation7], 16
        $region40: #{tpu_custom_call.1} parent=31 // pred_fallthru
          _
        %187 = sfence
        %s188 = sand.u32 %s30, 1
        %s189 = scalar_lea.sflag [#allocation5], %s188
        %s190 = sand.u32 %s30, 1
        %s191 = smul.addr %s190, 64
        %s192 = scalar_lea.vmem [#allocation4], %s191
        %p193 = pneg %p43
        %p194 = pneg %p40
        %p195 = pneg %p64
        %p196 = pneg %p61
        %p197 = pneg %p85
        %p198 = pneg %p82
        %p199 = pneg %p111
        %p200 = pneg %p108
        %s201 = sand.u32 %s98, 1
        %s202 = scalar_lea.sflag [#allocation6], %s201
        %s203 = sand.u32 %s98, 1
        %s204 = smul.addr %s203, 16
        %s205 = scalar_lea.vmem [#allocation9], %s204
        %206 = vst [vmem:[#allocation2] sm:$0xff] 0.0
        %207 = vst [vmem:[#allocation2 + $0x8] sm:$0xff] 0.0
        %208 = vst [vmem:[#allocation2 + $0x10] sm:$0x3f] 0.0
        %209 = vst [vmem:[#allocation2 + $0x18] sm:$0xff] 0.0
        %210 = vst [vmem:[#allocation2 + $0x20] sm:$0xff] 0.0
        %211 = vst [vmem:[#allocation2 + $0x28] sm:$0x3f] 0.0
        %v212 = vld [vmem:[%s176] sm:$0xff]
        %v213 = vld [vmem:[%s176 + $0x8] sm:$0xff]
        %s214 = scalar_lea.vmem %s176, 16 [#allocation4]
        %v215 = vld [vmem:[%s214] sm:$0xff]
        %v216 = vld [vmem:[%s214 + $0x8] sm:$0xff]
        %v217 = vadd.f32 %v212, %v215
        %v218 = vadd.f32 %v213, %v216
        %v219 = vmax.f32 %v212, %v215
        %v220 = vmax.f32 %v213, %v216
        %s221 = scalar_lea.vmem %s176, 32 [#allocation4]
        %v222 = vld [vmem:[%s221] sm:$0xff]
        %v223 = vld [vmem:[%s221 + $0x8] sm:$0xff]
        %v224 = vadd.f32 %v217, %v222
        %v225 = vadd.f32 %v218, %v223
        %v226 = vmax.f32 %v219, %v222
        %v227 = vmax.f32 %v220, %v223
        %s228 = scalar_lea.vmem %s176, 48 [#allocation4]
        %v229 = vld [vmem:[%s228] sm:$0xff]
        %v230 = vld [vmem:[%s228 + $0x8] sm:$0xff]
        %v231 = vadd.f32 %v224, %v229
        %v232 = vadd.f32 %v225, %v230
        %v233 = vmax.f32 %v226, %v229
        %v234 = vmax.f32 %v227, %v230
        %v235 = vmul.f32 %v231, 0.25
        %v236 = vmul.f32 %v232, 0.25
        %239 = vrot.lane.b32.xlu0 %v235, 3
        %v240 = vpop.permute.xlu0 %239
        %241 = vrot.lane.b32.xlu0 %v236, 3
        %v242 = vpop.permute.xlu0 %241
        %vm245 = vcmask 154648
        %246 = vst.msk [vmem:[#allocation2 + $0x3] sm:$0xff] %vm245, %v240
        %247 = vst.msk [vmem:[#allocation2 + $0xb] sm:$0xff] %vm245, %v242
        %250 = vrot.lane.b32.xlu0 %v233, 3
        %v251 = vpop.permute.xlu0 %250
        %252 = vrot.lane.b32.xlu0 %v234, 3
        %v253 = vpop.permute.xlu0 %252
        %s256 = scalar_lea.vmem [#allocation2], 24
        %257 = vst.msk [vmem:[%s256 + $0x3] sm:$0xff] %vm245, %v251
        %258 = vst.msk [vmem:[%s256 + $0xb] sm:$0xff] %vm245, %v253
        %v259 = vld [vmem:[#allocation2] sm:$0xff]
        %v260 = vld [vmem:[#allocation2 + $0x8] sm:$0xff]
        %s261 = sld [smem:[#allocation8]]
        %v262 = vstv %s261
        %v263 = vmul.f32 %v262, %v259
        %v264 = vmul.f32 %v262, %v260
        %v265 = vadd.f32 %v263, 0.0
        %v266 = vadd.f32 %v264, 0.0
        %s267 = sld [smem:[#allocation8 + $0x1]]
        %v268 = vstv %s267
        %v269 = vmul.f32 %v268, %v259
        %v270 = vmul.f32 %v268, %v260
        %273 = vrot.lane.b32.xlu0 %v269, 127
        %v274 = vpop.permute.xlu0 %273
        %275 = vrot.lane.b32.xlu0 %v270, 127
        %v276 = vpop.permute.xlu0 %275
        %v279 = vadd.f32 %v265, %v274
        %v280 = vadd.f32 %v266, %v276
        %s281 = sld [smem:[#allocation8 + $0x2]]
        %v282 = vstv %s281
        %v283 = vmul.f32 %v282, %v259
        %v284 = vmul.f32 %v282, %v260
        %287 = vrot.lane.b32.xlu0 %v283, 126
        %v288 = vpop.permute.xlu0 %287
        %289 = vrot.lane.b32.xlu0 %v284, 126
        %v290 = vpop.permute.xlu0 %289
        %v293 = vadd.f32 %v279, %v288
        %v294 = vadd.f32 %v280, %v290
        %s295 = sld [smem:[#allocation8 + $0x3]]
        %v296 = vstv %s295
        %v297 = vmul.f32 %v296, %v259
        %v298 = vmul.f32 %v296, %v260
        %301 = vrot.lane.b32.xlu0 %v297, 125
        %v302 = vpop.permute.xlu0 %301
        %303 = vrot.lane.b32.xlu0 %v298, 125
        %v304 = vpop.permute.xlu0 %303
        %v307 = vadd.f32 %v293, %v302
        %v308 = vadd.f32 %v294, %v304
        %s309 = sld [smem:[#allocation8 + $0x4]]
        %v310 = vstv %s309
        %v311 = vmul.f32 %v310, %v259
        %v312 = vmul.f32 %v310, %v260
        %315 = vrot.lane.b32.xlu0 %v311, 124
        %v316 = vpop.permute.xlu0 %315
        %317 = vrot.lane.b32.xlu0 %v312, 124
        %v318 = vpop.permute.xlu0 %317
        %v321 = vadd.f32 %v307, %v316
        %v322 = vadd.f32 %v308, %v318
        %s323 = sld [smem:[#allocation8 + $0x5]]
        %v324 = vstv %s323
        %v325 = vmul.f32 %v324, %v259
        %v326 = vmul.f32 %v324, %v260
        %329 = vrot.lane.b32.xlu0 %v325, 123
        %v330 = vpop.permute.xlu0 %329
        %331 = vrot.lane.b32.xlu0 %v326, 123
        %v332 = vpop.permute.xlu0 %331
        %v335 = vadd.f32 %v321, %v330
        %v336 = vadd.f32 %v322, %v332
        %s337 = sld [smem:[#allocation8 + $0x6]]
        %v338 = vstv %s337
        %v339 = vmul.f32 %v338, %v259
        %v340 = vmul.f32 %v338, %v260
        %343 = vrot.lane.b32.xlu0 %v339, 122
        %v344 = vpop.permute.xlu0 %343
        %345 = vrot.lane.b32.xlu0 %v340, 122
        %v346 = vpop.permute.xlu0 %345
        %v349 = vadd.f32 %v335, %v344
        %v350 = vadd.f32 %v336, %v346
        %v351 = vld [vmem:[#allocation2 + $0x1] sm:$0xff]
        %v352 = vld [vmem:[#allocation2 + $0x9] sm:$0xff]
        %s353 = sld [smem:[#allocation8 + $0x7]]
        %v354 = vstv %s353
        %v355 = vmul.f32 %v354, %v351
        %v356 = vmul.f32 %v354, %v352
        %v357 = vadd.f32 %v355, 0.0
        %v358 = vadd.f32 %v356, 0.0
        %s359 = sld [smem:[#allocation8 + $0x8]]
        %v360 = vstv %s359
        %v361 = vmul.f32 %v360, %v351
        %v362 = vmul.f32 %v360, %v352
        %365 = vrot.lane.b32.xlu0 %v361, 127
        %v366 = vpop.permute.xlu0 %365
        %367 = vrot.lane.b32.xlu0 %v362, 127
        %v368 = vpop.permute.xlu0 %367
        %v371 = vadd.f32 %v357, %v366
        %v372 = vadd.f32 %v358, %v368
        %s373 = sld [smem:[#allocation8 + $0x9]]
        %v374 = vstv %s373
        %v375 = vmul.f32 %v374, %v351
        %v376 = vmul.f32 %v374, %v352
        %379 = vrot.lane.b32.xlu0 %v375, 126
        %v380 = vpop.permute.xlu0 %379
        %381 = vrot.lane.b32.xlu0 %v376, 126
        %v382 = vpop.permute.xlu0 %381
        %v385 = vadd.f32 %v371, %v380
        %v386 = vadd.f32 %v372, %v382
        %s387 = sld [smem:[#allocation8 + $0xa]]
        %v388 = vstv %s387
        %v389 = vmul.f32 %v388, %v351
        %v390 = vmul.f32 %v388, %v352
        %393 = vrot.lane.b32.xlu0 %v389, 125
        %v394 = vpop.permute.xlu0 %393
        %395 = vrot.lane.b32.xlu0 %v390, 125
        %v396 = vpop.permute.xlu0 %395
        %v399 = vadd.f32 %v385, %v394
        %v400 = vadd.f32 %v386, %v396
        %s401 = sld [smem:[#allocation8 + $0xb]]
        %v402 = vstv %s401
        %v403 = vmul.f32 %v402, %v351
        %v404 = vmul.f32 %v402, %v352
        %407 = vrot.lane.b32.xlu0 %v403, 124
        %v408 = vpop.permute.xlu0 %407
        %409 = vrot.lane.b32.xlu0 %v404, 124
        %v410 = vpop.permute.xlu0 %409
        %v413 = vadd.f32 %v399, %v408
        %v414 = vadd.f32 %v400, %v410
        %s415 = sld [smem:[#allocation8 + $0xc]]
        %v416 = vstv %s415
        %v417 = vmul.f32 %v416, %v351
        %v418 = vmul.f32 %v416, %v352
        %421 = vrot.lane.b32.xlu0 %v417, 123
        %v422 = vpop.permute.xlu0 %421
        %423 = vrot.lane.b32.xlu0 %v418, 123
        %v424 = vpop.permute.xlu0 %423
        %v427 = vadd.f32 %v413, %v422
        %v428 = vadd.f32 %v414, %v424
        %s429 = sld [smem:[#allocation8 + $0xd]]
        %v430 = vstv %s429
        %v431 = vmul.f32 %v430, %v351
        %v432 = vmul.f32 %v430, %v352
        %435 = vrot.lane.b32.xlu0 %v431, 122
        %v436 = vpop.permute.xlu0 %435
        %437 = vrot.lane.b32.xlu0 %v432, 122
        %v438 = vpop.permute.xlu0 %437
        %v441 = vadd.f32 %v427, %v436
        %v442 = vadd.f32 %v428, %v438
        %v443 = vld [vmem:[#allocation2 + $0x2] sm:$0xff]
        %v444 = vld [vmem:[#allocation2 + $0xa] sm:$0xff]
        %s445 = sld [smem:[#allocation8 + $0xe]]
        %v446 = vstv %s445
        %v447 = vmul.f32 %v446, %v443
        %v448 = vmul.f32 %v446, %v444
        %v449 = vadd.f32 %v349, %v447
        %v450 = vadd.f32 %v350, %v448
        %s451 = sld [smem:[#allocation8 + $0xf]]
        %v452 = vstv %s451
        %v453 = vmul.f32 %v452, %v443
        %v454 = vmul.f32 %v452, %v444
        %457 = vrot.lane.b32.xlu0 %v453, 127
        %v458 = vpop.permute.xlu0 %457
        %459 = vrot.lane.b32.xlu0 %v454, 127
        %v460 = vpop.permute.xlu0 %459
        %v463 = vadd.f32 %v449, %v458
        %v464 = vadd.f32 %v450, %v460
        %s465 = sld [smem:[#allocation8 + $0x10]]
        %v466 = vstv %s465
        %v467 = vmul.f32 %v466, %v443
        %v468 = vmul.f32 %v466, %v444
        %471 = vrot.lane.b32.xlu0 %v467, 126
        %v472 = vpop.permute.xlu0 %471
        %473 = vrot.lane.b32.xlu0 %v468, 126
        %v474 = vpop.permute.xlu0 %473
        %v477 = vadd.f32 %v463, %v472
        %v478 = vadd.f32 %v464, %v474
        %s479 = sld [smem:[#allocation8 + $0x11]]
        %v480 = vstv %s479
        %v481 = vmul.f32 %v480, %v443
        %v482 = vmul.f32 %v480, %v444
        %485 = vrot.lane.b32.xlu0 %v481, 125
        %v486 = vpop.permute.xlu0 %485
        %487 = vrot.lane.b32.xlu0 %v482, 125
        %v488 = vpop.permute.xlu0 %487
        %v491 = vadd.f32 %v477, %v486
        %v492 = vadd.f32 %v478, %v488
        %s493 = sld [smem:[#allocation8 + $0x12]]
        %v494 = vstv %s493
        %v495 = vmul.f32 %v494, %v443
        %v496 = vmul.f32 %v494, %v444
        %499 = vrot.lane.b32.xlu0 %v495, 124
        %v500 = vpop.permute.xlu0 %499
        %501 = vrot.lane.b32.xlu0 %v496, 124
        %v502 = vpop.permute.xlu0 %501
        %v505 = vadd.f32 %v491, %v500
        %v506 = vadd.f32 %v492, %v502
        %s507 = sld [smem:[#allocation8 + $0x13]]
        %v508 = vstv %s507
        %v509 = vmul.f32 %v508, %v443
        %v510 = vmul.f32 %v508, %v444
        %513 = vrot.lane.b32.xlu0 %v509, 123
        %v514 = vpop.permute.xlu0 %513
        %515 = vrot.lane.b32.xlu0 %v510, 123
        %v516 = vpop.permute.xlu0 %515
        %v519 = vadd.f32 %v505, %v514
        %v520 = vadd.f32 %v506, %v516
        %s521 = sld [smem:[#allocation8 + $0x14]]
        %v522 = vstv %s521
        %v523 = vmul.f32 %v522, %v443
        %v524 = vmul.f32 %v522, %v444
        %527 = vrot.lane.b32.xlu0 %v523, 122
        %v528 = vpop.permute.xlu0 %527
        %529 = vrot.lane.b32.xlu0 %v524, 122
        %v530 = vpop.permute.xlu0 %529
        %v533 = vadd.f32 %v519, %v528
        %v534 = vadd.f32 %v520, %v530
        %v535 = vld [vmem:[#allocation2 + $0x3] sm:$0xff]
        %v536 = vld [vmem:[#allocation2 + $0xb] sm:$0xff]
        %s537 = sld [smem:[#allocation8 + $0x15]]
        %v538 = vstv %s537
        %v539 = vmul.f32 %v538, %v535
        %v540 = vmul.f32 %v538, %v536
        %v541 = vadd.f32 %v441, %v539
        %v542 = vadd.f32 %v442, %v540
        %s543 = sld [smem:[#allocation8 + $0x16]]
        %v544 = vstv %s543
        %v545 = vmul.f32 %v544, %v535
        %v546 = vmul.f32 %v544, %v536
        %549 = vrot.lane.b32.xlu0 %v545, 127
        %v550 = vpop.permute.xlu0 %549
        %551 = vrot.lane.b32.xlu0 %v546, 127
        %v552 = vpop.permute.xlu0 %551
        %v555 = vadd.f32 %v541, %v550
        %v556 = vadd.f32 %v542, %v552
        %s557 = sld [smem:[#allocation8 + $0x17]]
        %v558 = vstv %s557
        %v559 = vmul.f32 %v558, %v535
        %v560 = vmul.f32 %v558, %v536
        %563 = vrot.lane.b32.xlu0 %v559, 126
        %v564 = vpop.permute.xlu0 %563
        %565 = vrot.lane.b32.xlu0 %v560, 126
        %v566 = vpop.permute.xlu0 %565
        %v569 = vadd.f32 %v555, %v564
        %v570 = vadd.f32 %v556, %v566
        %s571 = sld [smem:[#allocation8 + $0x18]]
        %v572 = vstv %s571
        %v573 = vmul.f32 %v572, %v535
        %v574 = vmul.f32 %v572, %v536
        %577 = vrot.lane.b32.xlu0 %v573, 125
        %v578 = vpop.permute.xlu0 %577
        %579 = vrot.lane.b32.xlu0 %v574, 125
        %v580 = vpop.permute.xlu0 %579
        %v583 = vadd.f32 %v569, %v578
        %v584 = vadd.f32 %v570, %v580
        %s585 = sld [smem:[#allocation8 + $0x19]]
        %v586 = vstv %s585
        %v587 = vmul.f32 %v586, %v535
        %v588 = vmul.f32 %v586, %v536
        %591 = vrot.lane.b32.xlu0 %v587, 124
        %v592 = vpop.permute.xlu0 %591
        %593 = vrot.lane.b32.xlu0 %v588, 124
        %v594 = vpop.permute.xlu0 %593
        %v597 = vadd.f32 %v583, %v592
        %v598 = vadd.f32 %v584, %v594
        %s599 = sld [smem:[#allocation8 + $0x1a]]
        %v600 = vstv %s599
        %v601 = vmul.f32 %v600, %v535
        %v602 = vmul.f32 %v600, %v536
        %605 = vrot.lane.b32.xlu0 %v601, 123
        %v606 = vpop.permute.xlu0 %605
        %607 = vrot.lane.b32.xlu0 %v602, 123
        %v608 = vpop.permute.xlu0 %607
        %v611 = vadd.f32 %v597, %v606
        %v612 = vadd.f32 %v598, %v608
        %s613 = sld [smem:[#allocation8 + $0x1b]]
        %v614 = vstv %s613
        %v615 = vmul.f32 %v614, %v535
        %v616 = vmul.f32 %v614, %v536
        %619 = vrot.lane.b32.xlu0 %v615, 122
        %v620 = vpop.permute.xlu0 %619
        %621 = vrot.lane.b32.xlu0 %v616, 122
        %v622 = vpop.permute.xlu0 %621
        %v625 = vadd.f32 %v611, %v620
        %v626 = vadd.f32 %v612, %v622
        %v627 = vld [vmem:[#allocation2 + $0x4] sm:$0xff]
        %v628 = vld [vmem:[#allocation2 + $0xc] sm:$0xff]
        %s629 = sld [smem:[#allocation8 + $0x1c]]
        %v630 = vstv %s629
        %v631 = vmul.f32 %v630, %v627
        %v632 = vmul.f32 %v630, %v628
        %v633 = vadd.f32 %v533, %v631
        %v634 = vadd.f32 %v534, %v632
        %s635 = sld [smem:[#allocation8 + $0x1d]]
        %v636 = vstv %s635
        %v637 = vmul.f32 %v636, %v627
        %v638 = vmul.f32 %v636, %v628
        %641 = vrot.lane.b32.xlu0 %v637, 127
        %v642 = vpop.permute.xlu0 %641
        %643 = vrot.lane.b32.xlu0 %v638, 127
        %v644 = vpop.permute.xlu0 %643
        %v647 = vadd.f32 %v633, %v642
        %v648 = vadd.f32 %v634, %v644
        %s649 = sld [smem:[#allocation8 + $0x1e]]
        %v650 = vstv %s649
        %v651 = vmul.f32 %v650, %v627
        %v652 = vmul.f32 %v650, %v628
        %655 = vrot.lane.b32.xlu0 %v651, 126
        %v656 = vpop.permute.xlu0 %655
        %657 = vrot.lane.b32.xlu0 %v652, 126
        %v658 = vpop.permute.xlu0 %657
        %v661 = vadd.f32 %v647, %v656
        %v662 = vadd.f32 %v648, %v658
        %s663 = sld [smem:[#allocation8 + $0x1f]]
        %v664 = vstv %s663
        %v665 = vmul.f32 %v664, %v627
        %v666 = vmul.f32 %v664, %v628
        %669 = vrot.lane.b32.xlu0 %v665, 125
        %v670 = vpop.permute.xlu0 %669
        %671 = vrot.lane.b32.xlu0 %v666, 125
        %v672 = vpop.permute.xlu0 %671
        %v675 = vadd.f32 %v661, %v670
        %v676 = vadd.f32 %v662, %v672
        %s677 = sld [smem:[#allocation8 + $0x20]]
        %v678 = vstv %s677
        %v679 = vmul.f32 %v678, %v627
        %v680 = vmul.f32 %v678, %v628
        %683 = vrot.lane.b32.xlu0 %v679, 124
        %v684 = vpop.permute.xlu0 %683
        %685 = vrot.lane.b32.xlu0 %v680, 124
        %v686 = vpop.permute.xlu0 %685
        %v689 = vadd.f32 %v675, %v684
        %v690 = vadd.f32 %v676, %v686
        %s691 = sld [smem:[#allocation8 + $0x21]]
        %v692 = vstv %s691
        %v693 = vmul.f32 %v692, %v627
        %v694 = vmul.f32 %v692, %v628
        %697 = vrot.lane.b32.xlu0 %v693, 123
        %v698 = vpop.permute.xlu0 %697
        %699 = vrot.lane.b32.xlu0 %v694, 123
        %v700 = vpop.permute.xlu0 %699
        %v703 = vadd.f32 %v689, %v698
        %v704 = vadd.f32 %v690, %v700
        %s705 = sld [smem:[#allocation8 + $0x22]]
        %v706 = vstv %s705
        %v707 = vmul.f32 %v706, %v627
        %v708 = vmul.f32 %v706, %v628
        %711 = vrot.lane.b32.xlu0 %v707, 122
        %v712 = vpop.permute.xlu0 %711
        %713 = vrot.lane.b32.xlu0 %v708, 122
        %v714 = vpop.permute.xlu0 %713
        %v717 = vadd.f32 %v703, %v712
        %v718 = vadd.f32 %v704, %v714
        %v719 = vld [vmem:[#allocation2 + $0x5] sm:$0xff]
        %v720 = vld [vmem:[#allocation2 + $0xd] sm:$0xff]
        %s721 = sld [smem:[#allocation8 + $0x23]]
        %v722 = vstv %s721
        %v723 = vmul.f32 %v722, %v719
        %v724 = vmul.f32 %v722, %v720
        %v725 = vadd.f32 %v625, %v723
        %v726 = vadd.f32 %v626, %v724
        %s727 = sld [smem:[#allocation8 + $0x24]]
        %v728 = vstv %s727
        %v729 = vmul.f32 %v728, %v719
        %v730 = vmul.f32 %v728, %v720
        %733 = vrot.lane.b32.xlu0 %v729, 127
        %v734 = vpop.permute.xlu0 %733
        %735 = vrot.lane.b32.xlu0 %v730, 127
        %v736 = vpop.permute.xlu0 %735
        %v739 = vadd.f32 %v725, %v734
        %v740 = vadd.f32 %v726, %v736
        %s741 = sld [smem:[#allocation8 + $0x25]]
        %v742 = vstv %s741
        %v743 = vmul.f32 %v742, %v719
        %v744 = vmul.f32 %v742, %v720
        %747 = vrot.lane.b32.xlu0 %v743, 126
        %v748 = vpop.permute.xlu0 %747
        %749 = vrot.lane.b32.xlu0 %v744, 126
        %v750 = vpop.permute.xlu0 %749
        %v753 = vadd.f32 %v739, %v748
        %v754 = vadd.f32 %v740, %v750
        %s755 = sld [smem:[#allocation8 + $0x26]]
        %v756 = vstv %s755
        %v757 = vmul.f32 %v756, %v719
        %v758 = vmul.f32 %v756, %v720
        %761 = vrot.lane.b32.xlu0 %v757, 125
        %v762 = vpop.permute.xlu0 %761
        %763 = vrot.lane.b32.xlu0 %v758, 125
        %v764 = vpop.permute.xlu0 %763
        %v767 = vadd.f32 %v753, %v762
        %v768 = vadd.f32 %v754, %v764
        %s769 = sld [smem:[#allocation8 + $0x27]]
        %v770 = vstv %s769
        %v771 = vmul.f32 %v770, %v719
        %v772 = vmul.f32 %v770, %v720
        %775 = vrot.lane.b32.xlu0 %v771, 124
        %v776 = vpop.permute.xlu0 %775
        %777 = vrot.lane.b32.xlu0 %v772, 124
        %v778 = vpop.permute.xlu0 %777
        %v781 = vadd.f32 %v767, %v776
        %v782 = vadd.f32 %v768, %v778
        %s783 = sld [smem:[#allocation8 + $0x28]]
        %v784 = vstv %s783
        %v785 = vmul.f32 %v784, %v719
        %v786 = vmul.f32 %v784, %v720
        %789 = vrot.lane.b32.xlu0 %v785, 123
        %v790 = vpop.permute.xlu0 %789
        %791 = vrot.lane.b32.xlu0 %v786, 123
        %v792 = vpop.permute.xlu0 %791
        %v795 = vadd.f32 %v781, %v790
        %v796 = vadd.f32 %v782, %v792
        %s797 = sld [smem:[#allocation8 + $0x29]]
        %v798 = vstv %s797
        %v799 = vmul.f32 %v798, %v719
        %v800 = vmul.f32 %v798, %v720
        %803 = vrot.lane.b32.xlu0 %v799, 122
        %v804 = vpop.permute.xlu0 %803
        %805 = vrot.lane.b32.xlu0 %v800, 122
        %v806 = vpop.permute.xlu0 %805
        %v809 = vadd.f32 %v795, %v804
        %v810 = vadd.f32 %v796, %v806
        %v811 = vld [vmem:[#allocation2 + $0x6] sm:$0xff]
        %v812 = vld [vmem:[#allocation2 + $0xe] sm:$0xff]
        %s813 = sld [smem:[#allocation8 + $0x2a]]
        %v814 = vstv %s813
        %v815 = vmul.f32 %v814, %v811
        %v816 = vmul.f32 %v814, %v812
        %v817 = vadd.f32 %v717, %v815
        %v818 = vadd.f32 %v718, %v816
        %s819 = sld [smem:[#allocation8 + $0x2b]]
        %v820 = vstv %s819
        %v821 = vmul.f32 %v820, %v811
        %v822 = vmul.f32 %v820, %v812
        %825 = vrot.lane.b32.xlu0 %v821, 127
        %v826 = vpop.permute.xlu0 %825
        %827 = vrot.lane.b32.xlu0 %v822, 127
        %v828 = vpop.permute.xlu0 %827
        %v831 = vadd.f32 %v817, %v826
        %v832 = vadd.f32 %v818, %v828
        %s833 = sld [smem:[#allocation8 + $0x2c]]
        %v834 = vstv %s833
        %v835 = vmul.f32 %v834, %v811
        %v836 = vmul.f32 %v834, %v812
        %839 = vrot.lane.b32.xlu0 %v835, 126
        %v840 = vpop.permute.xlu0 %839
        %841 = vrot.lane.b32.xlu0 %v836, 126
        %v842 = vpop.permute.xlu0 %841
        %v845 = vadd.f32 %v831, %v840
        %v846 = vadd.f32 %v832, %v842
        %s847 = sld [smem:[#allocation8 + $0x2d]]
        %v848 = vstv %s847
        %v849 = vmul.f32 %v848, %v811
        %v850 = vmul.f32 %v848, %v812
        %853 = vrot.lane.b32.xlu0 %v849, 125
        %v854 = vpop.permute.xlu0 %853
        %855 = vrot.lane.b32.xlu0 %v850, 125
        %v856 = vpop.permute.xlu0 %855
        %v859 = vadd.f32 %v845, %v854
        %v860 = vadd.f32 %v846, %v856
        %s861 = sld [smem:[#allocation8 + $0x2e]]
        %v862 = vstv %s861
        %v863 = vmul.f32 %v862, %v811
        %v864 = vmul.f32 %v862, %v812
        %867 = vrot.lane.b32.xlu0 %v863, 124
        %v868 = vpop.permute.xlu0 %867
        %869 = vrot.lane.b32.xlu0 %v864, 124
        %v870 = vpop.permute.xlu0 %869
        %v873 = vadd.f32 %v859, %v868
        %v874 = vadd.f32 %v860, %v870
        %s875 = sld [smem:[#allocation8 + $0x2f]]
        %v876 = vstv %s875
        %v877 = vmul.f32 %v876, %v811
        %v878 = vmul.f32 %v876, %v812
        %881 = vrot.lane.b32.xlu0 %v877, 123
        %v882 = vpop.permute.xlu0 %881
        %883 = vrot.lane.b32.xlu0 %v878, 123
        %v884 = vpop.permute.xlu0 %883
        %v887 = vadd.f32 %v873, %v882
        %v888 = vadd.f32 %v874, %v884
        %s889 = sld [smem:[#allocation8 + $0x30]]
        %v890 = vstv %s889
        %v891 = vmul.f32 %v890, %v811
        %v892 = vmul.f32 %v890, %v812
        %895 = vrot.lane.b32.xlu0 %v891, 122
        %v896 = vpop.permute.xlu0 %895
        %897 = vrot.lane.b32.xlu0 %v892, 122
        %v898 = vpop.permute.xlu0 %897
        %v901 = vadd.f32 %v887, %v896
        %v902 = vadd.f32 %v888, %v898
        %v903 = vld [vmem:[%s256] sm:$0xff]
        %v904 = vld [vmem:[%s256 + $0x8] sm:$0xff]
        %s905 = sld [smem:[#allocation8 + $0x31]]
        %v906 = vstv %s905
        %v907 = vmul.f32 %v906, %v903
        %v908 = vmul.f32 %v906, %v904
        %v909 = vadd.f32 %v907, 0.0
        %v910 = vadd.f32 %v908, 0.0
        %s911 = sld [smem:[#allocation8 + $0x32]]
        %v912 = vstv %s911
        %v913 = vmul.f32 %v912, %v903
        %v914 = vmul.f32 %v912, %v904
        %917 = vrot.lane.b32.xlu0 %v913, 127
        %v918 = vpop.permute.xlu0 %917
        %919 = vrot.lane.b32.xlu0 %v914, 127
        %v920 = vpop.permute.xlu0 %919
        %v923 = vadd.f32 %v909, %v918
        %v924 = vadd.f32 %v910, %v920
        %s925 = sld [smem:[#allocation8 + $0x33]]
        %v926 = vstv %s925
        %v927 = vmul.f32 %v926, %v903
        %v928 = vmul.f32 %v926, %v904
        %931 = vrot.lane.b32.xlu0 %v927, 126
        %v932 = vpop.permute.xlu0 %931
        %933 = vrot.lane.b32.xlu0 %v928, 126
        %v934 = vpop.permute.xlu0 %933
        %v937 = vadd.f32 %v923, %v932
        %v938 = vadd.f32 %v924, %v934
        %s939 = sld [smem:[#allocation8 + $0x34]]
        %v940 = vstv %s939
        %v941 = vmul.f32 %v940, %v903
        %v942 = vmul.f32 %v940, %v904
        %945 = vrot.lane.b32.xlu0 %v941, 125
        %v946 = vpop.permute.xlu0 %945
        %947 = vrot.lane.b32.xlu0 %v942, 125
        %v948 = vpop.permute.xlu0 %947
        %v951 = vadd.f32 %v937, %v946
        %v952 = vadd.f32 %v938, %v948
        %s953 = sld [smem:[#allocation8 + $0x35]]
        %v954 = vstv %s953
        %v955 = vmul.f32 %v954, %v903
        %v956 = vmul.f32 %v954, %v904
        %959 = vrot.lane.b32.xlu0 %v955, 124
        %v960 = vpop.permute.xlu0 %959
        %961 = vrot.lane.b32.xlu0 %v956, 124
        %v962 = vpop.permute.xlu0 %961
        %v965 = vadd.f32 %v951, %v960
        %v966 = vadd.f32 %v952, %v962
        %s967 = sld [smem:[#allocation8 + $0x36]]
        %v968 = vstv %s967
        %v969 = vmul.f32 %v968, %v903
        %v970 = vmul.f32 %v968, %v904
        %973 = vrot.lane.b32.xlu0 %v969, 123
        %v974 = vpop.permute.xlu0 %973
        %975 = vrot.lane.b32.xlu0 %v970, 123
        %v976 = vpop.permute.xlu0 %975
        %v979 = vadd.f32 %v965, %v974
        %v980 = vadd.f32 %v966, %v976
        %s981 = sld [smem:[#allocation8 + $0x37]]
        %v982 = vstv %s981
        %v983 = vmul.f32 %v982, %v903
        %v984 = vmul.f32 %v982, %v904
        %987 = vrot.lane.b32.xlu0 %v983, 122
        %v988 = vpop.permute.xlu0 %987
        %989 = vrot.lane.b32.xlu0 %v984, 122
        %v990 = vpop.permute.xlu0 %989
        %v993 = vadd.f32 %v979, %v988
        %v994 = vadd.f32 %v980, %v990
        %v995 = vld [vmem:[%s256 + $0x1] sm:$0xff]
        %v996 = vld [vmem:[%s256 + $0x9] sm:$0xff]
        %s997 = sld [smem:[#allocation8 + $0x38]]
        %v998 = vstv %s997
        %v999 = vmul.f32 %v998, %v995
        %v1000 = vmul.f32 %v998, %v996
        %v1001 = vadd.f32 %v999, 0.0
        %v1002 = vadd.f32 %v1000, 0.0
        %s1003 = sld [smem:[#allocation8 + $0x39]]
        %v1004 = vstv %s1003
        %v1005 = vmul.f32 %v1004, %v995
        %v1006 = vmul.f32 %v1004, %v996
        %1009 = vrot.lane.b32.xlu0 %v1005, 127
        %v1010 = vpop.permute.xlu0 %1009
        %1011 = vrot.lane.b32.xlu0 %v1006, 127
        %v1012 = vpop.permute.xlu0 %1011
        %v1015 = vadd.f32 %v1001, %v1010
        %v1016 = vadd.f32 %v1002, %v1012
        %s1017 = sld [smem:[#allocation8 + $0x3a]]
        %v1018 = vstv %s1017
        %v1019 = vmul.f32 %v1018, %v995
        %v1020 = vmul.f32 %v1018, %v996
        %1023 = vrot.lane.b32.xlu0 %v1019, 126
        %v1024 = vpop.permute.xlu0 %1023
        %1025 = vrot.lane.b32.xlu0 %v1020, 126
        %v1026 = vpop.permute.xlu0 %1025
        %v1029 = vadd.f32 %v1015, %v1024
        %v1030 = vadd.f32 %v1016, %v1026
        %s1031 = sld [smem:[#allocation8 + $0x3b]]
        %v1032 = vstv %s1031
        %v1033 = vmul.f32 %v1032, %v995
        %v1034 = vmul.f32 %v1032, %v996
        %1037 = vrot.lane.b32.xlu0 %v1033, 125
        %v1038 = vpop.permute.xlu0 %1037
        %1039 = vrot.lane.b32.xlu0 %v1034, 125
        %v1040 = vpop.permute.xlu0 %1039
        %v1043 = vadd.f32 %v1029, %v1038
        %v1044 = vadd.f32 %v1030, %v1040
        %s1045 = sld [smem:[#allocation8 + $0x3c]]
        %v1046 = vstv %s1045
        %v1047 = vmul.f32 %v1046, %v995
        %v1048 = vmul.f32 %v1046, %v996
        %1051 = vrot.lane.b32.xlu0 %v1047, 124
        %v1052 = vpop.permute.xlu0 %1051
        %1053 = vrot.lane.b32.xlu0 %v1048, 124
        %v1054 = vpop.permute.xlu0 %1053
        %v1057 = vadd.f32 %v1043, %v1052
        %v1058 = vadd.f32 %v1044, %v1054
        %s1059 = sld [smem:[#allocation8 + $0x3d]]
        %v1060 = vstv %s1059
        %v1061 = vmul.f32 %v1060, %v995
        %v1062 = vmul.f32 %v1060, %v996
        %1065 = vrot.lane.b32.xlu0 %v1061, 123
        %v1066 = vpop.permute.xlu0 %1065
        %1067 = vrot.lane.b32.xlu0 %v1062, 123
        %v1068 = vpop.permute.xlu0 %1067
        %v1071 = vadd.f32 %v1057, %v1066
        %v1072 = vadd.f32 %v1058, %v1068
        %s1073 = sld [smem:[#allocation8 + $0x3e]]
        %v1074 = vstv %s1073
        %v1075 = vmul.f32 %v1074, %v995
        %v1076 = vmul.f32 %v1074, %v996
        %1079 = vrot.lane.b32.xlu0 %v1075, 122
        %v1080 = vpop.permute.xlu0 %1079
        %1081 = vrot.lane.b32.xlu0 %v1076, 122
        %v1082 = vpop.permute.xlu0 %1081
        %v1085 = vadd.f32 %v1071, %v1080
        %v1086 = vadd.f32 %v1072, %v1082
        %v1087 = vld [vmem:[%s256 + $0x2] sm:$0xff]
        %v1088 = vld [vmem:[%s256 + $0xa] sm:$0xff]
        %s1089 = sld [smem:[#allocation8 + $0x3f]]
        %v1090 = vstv %s1089
        %v1091 = vmul.f32 %v1090, %v1087
        %v1092 = vmul.f32 %v1090, %v1088
        %v1093 = vadd.f32 %v993, %v1091
        %v1094 = vadd.f32 %v994, %v1092
        %s1095 = sld [smem:[#allocation8 + $0x40]]
        %v1096 = vstv %s1095
        %v1097 = vmul.f32 %v1096, %v1087
        %v1098 = vmul.f32 %v1096, %v1088
        %1101 = vrot.lane.b32.xlu0 %v1097, 127
        %v1102 = vpop.permute.xlu0 %1101
        %1103 = vrot.lane.b32.xlu0 %v1098, 127
        %v1104 = vpop.permute.xlu0 %1103
        %v1107 = vadd.f32 %v1093, %v1102
        %v1108 = vadd.f32 %v1094, %v1104
        %s1109 = sld [smem:[#allocation8 + $0x41]]
        %v1110 = vstv %s1109
        %v1111 = vmul.f32 %v1110, %v1087
        %v1112 = vmul.f32 %v1110, %v1088
        %1115 = vrot.lane.b32.xlu0 %v1111, 126
        %v1116 = vpop.permute.xlu0 %1115
        %1117 = vrot.lane.b32.xlu0 %v1112, 126
        %v1118 = vpop.permute.xlu0 %1117
        %v1121 = vadd.f32 %v1107, %v1116
        %v1122 = vadd.f32 %v1108, %v1118
        %s1123 = sld [smem:[#allocation8 + $0x42]]
        %v1124 = vstv %s1123
        %v1125 = vmul.f32 %v1124, %v1087
        %v1126 = vmul.f32 %v1124, %v1088
        %1129 = vrot.lane.b32.xlu0 %v1125, 125
        %v1130 = vpop.permute.xlu0 %1129
        %1131 = vrot.lane.b32.xlu0 %v1126, 125
        %v1132 = vpop.permute.xlu0 %1131
        %v1135 = vadd.f32 %v1121, %v1130
        %v1136 = vadd.f32 %v1122, %v1132
        %s1137 = sld [smem:[#allocation8 + $0x43]]
        %v1138 = vstv %s1137
        %v1139 = vmul.f32 %v1138, %v1087
        %v1140 = vmul.f32 %v1138, %v1088
        %1143 = vrot.lane.b32.xlu0 %v1139, 124
        %v1144 = vpop.permute.xlu0 %1143
        %1145 = vrot.lane.b32.xlu0 %v1140, 124
        %v1146 = vpop.permute.xlu0 %1145
        %v1149 = vadd.f32 %v1135, %v1144
        %v1150 = vadd.f32 %v1136, %v1146
        %s1151 = sld [smem:[#allocation8 + $0x44]]
        %v1152 = vstv %s1151
        %v1153 = vmul.f32 %v1152, %v1087
        %v1154 = vmul.f32 %v1152, %v1088
        %1157 = vrot.lane.b32.xlu0 %v1153, 123
        %v1158 = vpop.permute.xlu0 %1157
        %1159 = vrot.lane.b32.xlu0 %v1154, 123
        %v1160 = vpop.permute.xlu0 %1159
        %v1163 = vadd.f32 %v1149, %v1158
        %v1164 = vadd.f32 %v1150, %v1160
        %s1165 = sld [smem:[#allocation8 + $0x45]]
        %v1166 = vstv %s1165
        %v1167 = vmul.f32 %v1166, %v1087
        %v1168 = vmul.f32 %v1166, %v1088
        %1171 = vrot.lane.b32.xlu0 %v1167, 122
        %v1172 = vpop.permute.xlu0 %1171
        %1173 = vrot.lane.b32.xlu0 %v1168, 122
        %v1174 = vpop.permute.xlu0 %1173
        %v1177 = vadd.f32 %v1163, %v1172
        %v1178 = vadd.f32 %v1164, %v1174
        %v1179 = vld [vmem:[%s256 + $0x3] sm:$0xff]
        %v1180 = vld [vmem:[%s256 + $0xb] sm:$0xff]
        %s1181 = sld [smem:[#allocation8 + $0x46]]
        %v1182 = vstv %s1181
        %v1183 = vmul.f32 %v1182, %v1179
        %v1184 = vmul.f32 %v1182, %v1180
        %v1185 = vadd.f32 %v1085, %v1183
        %v1186 = vadd.f32 %v1086, %v1184
        %s1187 = sld [smem:[#allocation8 + $0x47]]
        %v1188 = vstv %s1187
        %v1189 = vmul.f32 %v1188, %v1179
        %v1190 = vmul.f32 %v1188, %v1180
        %1193 = vrot.lane.b32.xlu0 %v1189, 127
        %v1194 = vpop.permute.xlu0 %1193
        %1195 = vrot.lane.b32.xlu0 %v1190, 127
        %v1196 = vpop.permute.xlu0 %1195
        %v1199 = vadd.f32 %v1185, %v1194
        %v1200 = vadd.f32 %v1186, %v1196
        %s1201 = sld [smem:[#allocation8 + $0x48]]
        %v1202 = vstv %s1201
        %v1203 = vmul.f32 %v1202, %v1179
        %v1204 = vmul.f32 %v1202, %v1180
        %1207 = vrot.lane.b32.xlu0 %v1203, 126
        %v1208 = vpop.permute.xlu0 %1207
        %1209 = vrot.lane.b32.xlu0 %v1204, 126
        %v1210 = vpop.permute.xlu0 %1209
        %v1213 = vadd.f32 %v1199, %v1208
        %v1214 = vadd.f32 %v1200, %v1210
        %s1215 = sld [smem:[#allocation8 + $0x49]]
        %v1216 = vstv %s1215
        %v1217 = vmul.f32 %v1216, %v1179
        %v1218 = vmul.f32 %v1216, %v1180
        %1221 = vrot.lane.b32.xlu0 %v1217, 125
        %v1222 = vpop.permute.xlu0 %1221
        %1223 = vrot.lane.b32.xlu0 %v1218, 125
        %v1224 = vpop.permute.xlu0 %1223
        %v1227 = vadd.f32 %v1213, %v1222
        %v1228 = vadd.f32 %v1214, %v1224
        %s1229 = sld [smem:[#allocation8 + $0x4a]]
        %v1230 = vstv %s1229
        %v1231 = vmul.f32 %v1230, %v1179
        %v1232 = vmul.f32 %v1230, %v1180
        %1235 = vrot.lane.b32.xlu0 %v1231, 124
        %v1236 = vpop.permute.xlu0 %1235
        %1237 = vrot.lane.b32.xlu0 %v1232, 124
        %v1238 = vpop.permute.xlu0 %1237
        %v1241 = vadd.f32 %v1227, %v1236
        %v1242 = vadd.f32 %v1228, %v1238
        %s1243 = sld [smem:[#allocation8 + $0x4b]]
        %v1244 = vstv %s1243
        %v1245 = vmul.f32 %v1244, %v1179
        %v1246 = vmul.f32 %v1244, %v1180
        %1249 = vrot.lane.b32.xlu0 %v1245, 123
        %v1250 = vpop.permute.xlu0 %1249
        %1251 = vrot.lane.b32.xlu0 %v1246, 123
        %v1252 = vpop.permute.xlu0 %1251
        %v1255 = vadd.f32 %v1241, %v1250
        %v1256 = vadd.f32 %v1242, %v1252
        %s1257 = sld [smem:[#allocation8 + $0x4c]]
        %v1258 = vstv %s1257
        %v1259 = vmul.f32 %v1258, %v1179
        %v1260 = vmul.f32 %v1258, %v1180
        %1263 = vrot.lane.b32.xlu0 %v1259, 122
        %v1264 = vpop.permute.xlu0 %1263
        %1265 = vrot.lane.b32.xlu0 %v1260, 122
        %v1266 = vpop.permute.xlu0 %1265
        %v1269 = vadd.f32 %v1255, %v1264
        %v1270 = vadd.f32 %v1256, %v1266
        %v1271 = vld [vmem:[%s256 + $0x4] sm:$0xff]
        %v1272 = vld [vmem:[%s256 + $0xc] sm:$0xff]
        %s1273 = sld [smem:[#allocation8 + $0x4d]]
        %v1274 = vstv %s1273
        %v1275 = vmul.f32 %v1274, %v1271
        %v1276 = vmul.f32 %v1274, %v1272
        %v1277 = vadd.f32 %v1177, %v1275
        %v1278 = vadd.f32 %v1178, %v1276
        %s1279 = sld [smem:[#allocation8 + $0x4e]]
        %v1280 = vstv %s1279
        %v1281 = vmul.f32 %v1280, %v1271
        %v1282 = vmul.f32 %v1280, %v1272
        %1285 = vrot.lane.b32.xlu0 %v1281, 127
        %v1286 = vpop.permute.xlu0 %1285
        %1287 = vrot.lane.b32.xlu0 %v1282, 127
        %v1288 = vpop.permute.xlu0 %1287
        %v1291 = vadd.f32 %v1277, %v1286
        %v1292 = vadd.f32 %v1278, %v1288
        %s1293 = sld [smem:[#allocation8 + $0x4f]]
        %v1294 = vstv %s1293
        %v1295 = vmul.f32 %v1294, %v1271
        %v1296 = vmul.f32 %v1294, %v1272
        %1299 = vrot.lane.b32.xlu0 %v1295, 126
        %v1300 = vpop.permute.xlu0 %1299
        %1301 = vrot.lane.b32.xlu0 %v1296, 126
        %v1302 = vpop.permute.xlu0 %1301
        %v1305 = vadd.f32 %v1291, %v1300
        %v1306 = vadd.f32 %v1292, %v1302
        %s1307 = sld [smem:[#allocation8 + $0x50]]
        %v1308 = vstv %s1307
        %v1309 = vmul.f32 %v1308, %v1271
        %v1310 = vmul.f32 %v1308, %v1272
        %1313 = vrot.lane.b32.xlu0 %v1309, 125
        %v1314 = vpop.permute.xlu0 %1313
        %1315 = vrot.lane.b32.xlu0 %v1310, 125
        %v1316 = vpop.permute.xlu0 %1315
        %v1319 = vadd.f32 %v1305, %v1314
        %v1320 = vadd.f32 %v1306, %v1316
        %s1321 = sld [smem:[#allocation8 + $0x51]]
        %v1322 = vstv %s1321
        %v1323 = vmul.f32 %v1322, %v1271
        %v1324 = vmul.f32 %v1322, %v1272
        %1327 = vrot.lane.b32.xlu0 %v1323, 124
        %v1328 = vpop.permute.xlu0 %1327
        %1329 = vrot.lane.b32.xlu0 %v1324, 124
        %v1330 = vpop.permute.xlu0 %1329
        %v1333 = vadd.f32 %v1319, %v1328
        %v1334 = vadd.f32 %v1320, %v1330
        %s1335 = sld [smem:[#allocation8 + $0x52]]
        %v1336 = vstv %s1335
        %v1337 = vmul.f32 %v1336, %v1271
        %v1338 = vmul.f32 %v1336, %v1272
        %1341 = vrot.lane.b32.xlu0 %v1337, 123
        %v1342 = vpop.permute.xlu0 %1341
        %1343 = vrot.lane.b32.xlu0 %v1338, 123
        %v1344 = vpop.permute.xlu0 %1343
        %v1347 = vadd.f32 %v1333, %v1342
        %v1348 = vadd.f32 %v1334, %v1344
        %s1349 = sld [smem:[#allocation8 + $0x53]]
        %v1350 = vstv %s1349
        %v1351 = vmul.f32 %v1350, %v1271
        %v1352 = vmul.f32 %v1350, %v1272
        %1355 = vrot.lane.b32.xlu0 %v1351, 122
        %v1356 = vpop.permute.xlu0 %1355
        %1357 = vrot.lane.b32.xlu0 %v1352, 122
        %v1358 = vpop.permute.xlu0 %1357
        %v1361 = vadd.f32 %v1347, %v1356
        %v1362 = vadd.f32 %v1348, %v1358
        %v1363 = vld [vmem:[%s256 + $0x5] sm:$0xff]
        %v1364 = vld [vmem:[%s256 + $0xd] sm:$0xff]
        %s1365 = sld [smem:[#allocation8 + $0x54]]
        %v1366 = vstv %s1365
        %v1367 = vmul.f32 %v1366, %v1363
        %v1368 = vmul.f32 %v1366, %v1364
        %v1369 = vadd.f32 %v1269, %v1367
        %v1370 = vadd.f32 %v1270, %v1368
        %s1371 = sld [smem:[#allocation8 + $0x55]]
        %v1372 = vstv %s1371
        %v1373 = vmul.f32 %v1372, %v1363
        %v1374 = vmul.f32 %v1372, %v1364
        %1377 = vrot.lane.b32.xlu0 %v1373, 127
        %v1378 = vpop.permute.xlu0 %1377
        %1379 = vrot.lane.b32.xlu0 %v1374, 127
        %v1380 = vpop.permute.xlu0 %1379
        %v1383 = vadd.f32 %v1369, %v1378
        %v1384 = vadd.f32 %v1370, %v1380
        %s1385 = sld [smem:[#allocation8 + $0x56]]
        %v1386 = vstv %s1385
        %v1387 = vmul.f32 %v1386, %v1363
        %v1388 = vmul.f32 %v1386, %v1364
        %1391 = vrot.lane.b32.xlu0 %v1387, 126
        %v1392 = vpop.permute.xlu0 %1391
        %1393 = vrot.lane.b32.xlu0 %v1388, 126
        %v1394 = vpop.permute.xlu0 %1393
        %v1397 = vadd.f32 %v1383, %v1392
        %v1398 = vadd.f32 %v1384, %v1394
        %s1399 = sld [smem:[#allocation8 + $0x57]]
        %v1400 = vstv %s1399
        %v1401 = vmul.f32 %v1400, %v1363
        %v1402 = vmul.f32 %v1400, %v1364
        %1405 = vrot.lane.b32.xlu0 %v1401, 125
        %v1406 = vpop.permute.xlu0 %1405
        %1407 = vrot.lane.b32.xlu0 %v1402, 125
        %v1408 = vpop.permute.xlu0 %1407
        %v1411 = vadd.f32 %v1397, %v1406
        %v1412 = vadd.f32 %v1398, %v1408
        %s1413 = sld [smem:[#allocation8 + $0x58]]
        %v1414 = vstv %s1413
        %v1415 = vmul.f32 %v1414, %v1363
        %v1416 = vmul.f32 %v1414, %v1364
        %1419 = vrot.lane.b32.xlu0 %v1415, 124
        %v1420 = vpop.permute.xlu0 %1419
        %1421 = vrot.lane.b32.xlu0 %v1416, 124
        %v1422 = vpop.permute.xlu0 %1421
        %v1425 = vadd.f32 %v1411, %v1420
        %v1426 = vadd.f32 %v1412, %v1422
        %s1427 = sld [smem:[#allocation8 + $0x59]]
        %v1428 = vstv %s1427
        %v1429 = vmul.f32 %v1428, %v1363
        %v1430 = vmul.f32 %v1428, %v1364
        %1433 = vrot.lane.b32.xlu0 %v1429, 123
        %v1434 = vpop.permute.xlu0 %1433
        %1435 = vrot.lane.b32.xlu0 %v1430, 123
        %v1436 = vpop.permute.xlu0 %1435
        %v1439 = vadd.f32 %v1425, %v1434
        %v1440 = vadd.f32 %v1426, %v1436
        %s1441 = sld [smem:[#allocation8 + $0x5a]]
        %v1442 = vstv %s1441
        %v1443 = vmul.f32 %v1442, %v1363
        %v1444 = vmul.f32 %v1442, %v1364
        %1447 = vrot.lane.b32.xlu0 %v1443, 122
        %v1448 = vpop.permute.xlu0 %1447
        %1449 = vrot.lane.b32.xlu0 %v1444, 122
        %v1450 = vpop.permute.xlu0 %1449
        %v1453 = vadd.f32 %v1439, %v1448
        %v1454 = vadd.f32 %v1440, %v1450
        %v1455 = vld [vmem:[%s256 + $0x6] sm:$0xff]
        %v1456 = vld [vmem:[%s256 + $0xe] sm:$0xff]
        %s1457 = sld [smem:[#allocation8 + $0x5b]]
        %v1458 = vstv %s1457
        %v1459 = vmul.f32 %v1458, %v1455
        %v1460 = vmul.f32 %v1458, %v1456
        %v1461 = vadd.f32 %v1361, %v1459
        %v1462 = vadd.f32 %v1362, %v1460
        %s1463 = sld [smem:[#allocation8 + $0x5c]]
        %v1464 = vstv %s1463
        %v1465 = vmul.f32 %v1464, %v1455
        %v1466 = vmul.f32 %v1464, %v1456
        %1469 = vrot.lane.b32.xlu0 %v1465, 127
        %v1470 = vpop.permute.xlu0 %1469
        %1471 = vrot.lane.b32.xlu0 %v1466, 127
        %v1472 = vpop.permute.xlu0 %1471
        %v1475 = vadd.f32 %v1461, %v1470
        %v1476 = vadd.f32 %v1462, %v1472
        %s1477 = sld [smem:[#allocation8 + $0x5d]]
        %v1478 = vstv %s1477
        %v1479 = vmul.f32 %v1478, %v1455
        %v1480 = vmul.f32 %v1478, %v1456
        %1483 = vrot.lane.b32.xlu0 %v1479, 126
        %v1484 = vpop.permute.xlu0 %1483
        %1485 = vrot.lane.b32.xlu0 %v1480, 126
        %v1486 = vpop.permute.xlu0 %1485
        %v1489 = vadd.f32 %v1475, %v1484
        %v1490 = vadd.f32 %v1476, %v1486
        %s1491 = sld [smem:[#allocation8 + $0x5e]]
        %v1492 = vstv %s1491
        %v1493 = vmul.f32 %v1492, %v1455
        %v1494 = vmul.f32 %v1492, %v1456
        %1497 = vrot.lane.b32.xlu0 %v1493, 125
        %v1498 = vpop.permute.xlu0 %1497
        %1499 = vrot.lane.b32.xlu0 %v1494, 125
        %v1500 = vpop.permute.xlu0 %1499
        %v1503 = vadd.f32 %v1489, %v1498
        %v1504 = vadd.f32 %v1490, %v1500
        %s1505 = sld [smem:[#allocation8 + $0x5f]]
        %v1506 = vstv %s1505
        %v1507 = vmul.f32 %v1506, %v1455
        %v1508 = vmul.f32 %v1506, %v1456
        %1511 = vrot.lane.b32.xlu0 %v1507, 124
        %v1512 = vpop.permute.xlu0 %1511
        %1513 = vrot.lane.b32.xlu0 %v1508, 124
        %v1514 = vpop.permute.xlu0 %1513
        %v1517 = vadd.f32 %v1503, %v1512
        %v1518 = vadd.f32 %v1504, %v1514
        %s1519 = sld [smem:[#allocation8 + $0x60]]
        %v1520 = vstv %s1519
        %v1521 = vmul.f32 %v1520, %v1455
        %v1522 = vmul.f32 %v1520, %v1456
        %1525 = vrot.lane.b32.xlu0 %v1521, 123
        %v1526 = vpop.permute.xlu0 %1525
        %1527 = vrot.lane.b32.xlu0 %v1522, 123
        %v1528 = vpop.permute.xlu0 %1527
        %v1531 = vadd.f32 %v1517, %v1526
        %v1532 = vadd.f32 %v1518, %v1528
        %s1533 = sld [smem:[#allocation8 + $0x61]]
        %v1534 = vstv %s1533
        %v1535 = vmul.f32 %v1534, %v1455
        %v1536 = vmul.f32 %v1534, %v1456
        %1539 = vrot.lane.b32.xlu0 %v1535, 122
        %v1540 = vpop.permute.xlu0 %1539
        %1541 = vrot.lane.b32.xlu0 %v1536, 122
        %v1542 = vpop.permute.xlu0 %1541
        %v1545 = vadd.f32 %v1531, %v1540
        %v1546 = vadd.f32 %v1532, %v1542
        %v1547 = vadd.f32 %v901, %v809
        %v1548 = vadd.f32 %v902, %v810
        %v1549 = vadd.f32 %v1545, %v1453
        %v1550 = vadd.f32 %v1546, %v1454
        %v1551 = vadd.f32 %v1547, %v1549
        %v1552 = vadd.f32 %v1548, %v1550
        %s1553 = sld [smem:[#allocation3]]
        %v1554 = vstv %s1553
        %v1555 = vadd.f32 %v1551, %v1554
        %v1556 = vadd.f32 %v1552, %v1554
        %vm1557 = vcmask 130048
        %1558 = vst.msk [vmem:[%s205] sm:$0xff] %vm1557, %v1555
        %1559 = vst.msk [vmem:[%s205 + $0x8] sm:$0xff] %vm1557, %v1556
        %s1560 = sand.u32 %s98, 1
        %s1561 = scalar_lea.sflag [#allocation6], %s1560
        %s1562 = sand.u32 %s98, 1
        %s1563 = smul.addr %s1562, 16
        %s1564 = scalar_lea.vmem [#allocation9], %s1563
        // Predicated region
        $region41: #{tpu_custom_call.1} parent=31 // pred_check
          %p1565 = pneg %p108
        $region42: #{tpu_custom_call.1} parent=31 // pred_check_branch
          %1567 = sbr.rel (%p1565) target = $region44
        $region43: #{tpu_custom_call.1} parent=31 // pred_region
          %1569 = vsyncadd %s1561, 0
          %s1570 = smul.addr %s22, 2
          %s1571 = smul.addr %s1570, 8
          %s1572 = scalar_lea.hbm %s3, %s1571
          %s1573 = sshll.u32 %s1564, 4
          %s1574 = int_to_ptr.vmem [resolvable:$true] %s1573
          %s1575 = sshll.u32 %s1572, 4
          %s1576 = int_to_ptr.hbm [resolvable:$true] %s1575
          %1581 = dma.vmem_to_hbm [thread:$0]  %s1574, 256, %s1576, %s1561, 128, 128, 8
        $region44: #{tpu_custom_call.1} parent=31 // pred_fallthru
          _
      $region32: #{tpu_custom_call.1} parent=5 // pred_fallthru
        _
      %p1582 = scmp.le.s32.totalorder 2, %s17
      // Predicated region
      $region45: #{tpu_custom_call.1} parent=5 // pred_check
        %p1583 = pneg %p1582
      $region46: #{tpu_custom_call.1} parent=5 // pred_check_branch
        %1585 = sbr.rel (%p1583) target = $region48
      $region47: #{tpu_custom_call.1} parent=5 // pred_region
        %s1586 = ssub.s32 %s17, 2
        // Predicated region
        $region49: #{tpu_custom_call.1} parent=47 // pred_check
          %p1587 = pneg %p114
        $region50: #{tpu_custom_call.1} parent=47 // pred_check_branch
          %1589 = sbr.rel (%p1587) target = $region52
        $region51: #{tpu_custom_call.1} parent=47 // pred_region
          %s1590 = sand.u32 %s99, 1
          %s1591 = scalar_lea.sflag [#allocation6], %s1590
          %s1592 = sand.u32 %s99, 1
          %s1593 = smul.addr %s1592, 16
          %s1594 = scalar_lea.vmem [#allocation9], %s1593
          %1596 = dma.done %s1591, 256
        $region52: #{tpu_custom_call.1} parent=47 // pred_fallthru
          _
      $region48: #{tpu_custom_call.1} parent=5 // pred_fallthru
        _
    $region6: #{tpu_custom_call.1} parent=1 // loop_footer
      %s21 = sadd.s32 1, %s17
    $region7: #{tpu_custom_call.1} parent=1 // loop_footer_branch
      %16 = sbr.rel target = $region3
    $region8: #{tpu_custom_call.1} parent=1 // loop_exit
      _
    %1597 = vsyncpa [#allocation5], 1
    %s1598 = scalar_lea.sflag [#allocation5], 1
    %1599 = vsyncpa %s1598, 1
    %1600 = vsyncpa [#allocation6], 1
    %s1601 = scalar_lea.sflag [#allocation6], 1
    %1602 = vsyncpa %s1601, 1
    %1603 = vsyncpa [#allocation7], 1
    %s1604 = scalar_lea.sflag [#allocation7], 1
    %1605 = vsyncpa %s1604, 1

</llo_original>
